<compile_context>
chip_gen: v5e
topology: v5e:2x2
jax: 0.10.0
libtpu: 0.0.40
codegen_flags: <defaults>
</compile_context>

<pallas_src>
import functools

import jax
import jax.numpy as jnp
from jax import lax
from jax.experimental import pallas as pl
from jax.experimental.pallas import tpu as pltpu

EPS = 1e-5
LANES = 128


def _round_up(x, m):
    return -(-x // m) * m


def _block_bytes(*blocks):
    tot = 0
    for shape, dtype in blocks:
        n = 1
        for d in shape:
            n *= int(d)
        tot += n * jnp.dtype(dtype).itemsize
    return tot


def _cparams(block_bytes):
    # 2x for double-buffering + margin; clamp so it also fits v7x's 64 MiB physical VMEM.
    limit = int(min(60 << 20, max(16 << 20, 2 * block_bytes + (4 << 20))))
    return pltpu.CompilerParams(dimension_semantics=("parallel",),
                                vmem_limit_bytes=limit)


# ------------------------------ in-kernel helpers ------------------------------
def _lane_pad(x, width):
    """Zero-extend the channel (lane) dim in VMEM; HBM keeps the true channel count."""
    c = x.shape[-1]
    if c == width:
        return x
    return jnp.concatenate(
        [x, jnp.zeros((x.shape[0], width - c), x.dtype)], axis=-1)


def _tap_slice(x, t, lo, stride):
    if stride == 1:
        return x[t:t + lo]
    # TODO(synk): strided tap slice only traced for stride>1, which the module itself
    # cannot use (residual shapes mismatch); stride=1 is the exercised path.
    return x[t:t + (lo - 1) * stride + 1:stride]


def _conv_taps(x_f32, w_bf16, k, stride, lo, cpad):
    """Conv as K shifted matmuls over a VMEM slab: im2col never touches HBM."""
    acc = None
    for t in range(k):
        xt = _tap_slice(x_f32, t, lo, stride).astype(jnp.bfloat16)
        part = jnp.dot(xt, w_bf16[t * cpad:(t + 1) * cpad, :],
                       preferred_element_type=jnp.float32)
        acc = part if acc is None else acc + part
    return acc


def _moments(acc):
    """Per-channel (sum, sumsq) partials from the f32 accumulator (before bf16 cast)."""
    s1 = jnp.sum(acc, axis=0, keepdims=True)
    s2 = jnp.sum(acc * acc, axis=0, keepdims=True)
    return jnp.concatenate([s1, s2], axis=0)          # (2, Cp)


# --------------------------------- Pallas kernels ---------------------------------
def _conv1_proj_kernel(x_ref, w1_ref, ws_ref, y1_ref, st1_ref, ysc_ref, stsc_ref,
                       *, k, stride, pad, cin_p, l1, lsc):
    """conv1 + fused 1x1 projection shortcut (x read from HBM once) + BN partials."""
    xv = _lane_pad(x_ref[0].astype(jnp.float32), cin_p)          # (Lp1, Cin_p)
    acc = _conv_taps(xv, w1_ref[...], k, stride, l1, cin_p)
    y1_ref[0] = acc.astype(y1_ref.dtype)
    st1_ref[0] = _moments(acc)
    # 1x1 strided projection: rows pad + j*stride of the padded slab == original x[:, j*s]
    xs = _tap_slice(xv, pad, lsc, stride).astype(jnp.bfloat16)
    accs = jnp.dot(xs, ws_ref[...], preferred_element_type=jnp.float32)
    ysc_ref[0] = accs.astype(ysc_ref.dtype)
    stsc_ref[0] = _moments(accs)


def _conv1_kernel(x_ref, w1_ref, y1_ref, st1_ref, *, k, stride, cin_p, l1):
    xv = _lane_pad(x_ref[0].astype(jnp.float32), cin_p)
    acc = _conv_taps(xv, w1_ref[...], k, stride, l1, cin_p)
    y1_ref[0] = acc.astype(y1_ref.dtype)
    st1_ref[0] = _moments(acc)


def _conv2_kernel(y1_ref, a1_ref, b1_ref, w2_ref, y2_ref, st2_ref,
                  *, k, stride, pad, cp, l2):
    """Fused BN1-apply + ReLU prologue, then conv2 (K shifted matmuls) + BN2 partials."""
    h = jnp.maximum(y1_ref[0].astype(jnp.float32) * a1_ref[...] + b1_ref[...], 0.0)
    if pad:
        z = jnp.zeros((pad, cp), jnp.float32)
        h = jnp.concatenate([z, h, z], axis=0)        # exact zeros at conv-pad rows
    acc = _conv_taps(h, w2_ref[...], k, stride, l2, cp)
    y2_ref[0] = acc.astype(y2_ref.dtype)
    st2_ref[0] = _moments(acc)


def _bn_add_relu_proj_kernel(y2_ref, ysc_ref, a2_ref, b2_ref, asc_ref, bsc_ref, o_ref,
                             *, cout):
    """out = relu(bn2(y2) + bn_sc(ysc)); only the Cout real channels are written."""
    main = y2_ref[0].astype(jnp.float32) * a2_ref[...] + b2_ref[...]
    sh = ysc_ref[0].astype(jnp.float32) * asc_ref[...] + bsc_ref[...]
    o_ref[0] = jnp.maximum(main + sh, 0.0)[:, :cout]


def _bn_add_relu_id_kernel(y2_ref, x_ref, a2_ref, b2_ref, o_ref, *, cout, pad, l2):
    """Identity shortcut variant: no affine on the shortcut, x read straight from HBM."""
    main = y2_ref[0].astype(jnp.float32) * a2_ref[...] + b2_ref[...]
    xs = x_ref[0][pad:pad + l2, :].astype(jnp.float32)           # (L2, Cout)
    o_ref[0] = jnp.maximum(main[:, :cout] + xs, 0.0)


# -------------------------------- wrapper-side math --------------------------------
def _bn_coeffs(stats, n, gamma, beta, cp):
    """Fold per-batch-item (sum, sumsq) into per-channel scale/shift (training-mode BN).

    Single-pass variance in f32; fine at these magnitudes / tolerances.
    """
    st = jnp.sum(stats, axis=0)                        # (2, Cp)
    mean = st[0] / n
    var = jnp.maximum(st[1] / n - mean * mean, 0.0)
    g = jnp.pad(gamma.astype(jnp.float32), (0, cp - gamma.shape[0]))
    be = jnp.pad(beta.astype(jnp.float32), (0, cp - beta.shape[0]))
    scale = g * lax.rsqrt(var + EPS)
    shift = be - mean * scale
    return scale.reshape(1, cp), shift.reshape(1, cp)


# ------------------------------------- forward -------------------------------------
def resblock1d_forward(x_ncl, params, *, kernel_size, stride, padding):
    """x_ncl: (B, Cin, L) as in PyTorch.  Returns (B, Cout, L_out)."""
    B, Cin, L = x_ncl.shape
    Cout = params["w1"].shape[0]
    K, s, p = kernel_size, stride, padding
    L1 = (L + 2 * p - K) // s + 1
    L2 = (L1 + 2 * p - K) // s + 1
    Lsc = (L - 1) // s + 1
    assert L2 == Lsc, "residual and main branch lengths must match"
    has_proj = (s != 1) or (Cin != Cout)

    f32, bf16 = jnp.float32, jnp.bfloat16
    Cp = _round_up(Cout, LANES)
    Cin_p = _round_up(Cin, LANES)
    Lp1 = L + 2 * p

    # channels-last + conv1 length padding + bf16 cast in ONE fused XLA pass over the
    # (tiny) input; channels stay unpadded in HBM (no 128-lane inflation of x).
    xp = jnp.pad(jnp.transpose(x_ncl, (0, 2, 1)),
                 ((0, 0), (p, p), (0, 0))).astype(bf16)

    # Weights as tap-major (K*Cpad, Cp) bf16 slabs; conv biases dropped (exactly
    # cancelled by the BN mean subtraction — the f32 reference keeps them).
    w1 = jnp.transpose(params["w1"], (2, 1, 0))                       # (K, Cin, Cout)
    w1 = jnp.pad(w1, ((0, 0), (0, Cin_p - Cin), (0, Cp - Cout)))
    w1 = w1.reshape(K * Cin_p, Cp).astype(bf16)
    w2 = jnp.transpose(params["w2"], (2, 1, 0))                       # (K, Cout, Cout)
    w2 = jnp.pad(w2, ((0, 0), (0, Cp - Cout), (0, Cp - Cout)))
    w2 = w2.reshape(K * Cp, Cp).astype(bf16)

    vec_spec = pl.BlockSpec((1, Cp), lambda b: (0, 0))

    # ---- stage A: conv1 (+ optional 1x1 projection), in-kernel im2col, BN partials ----
    if has_proj:
        ws = jnp.transpose(params["ws"], (2, 1, 0)).reshape(Cin, Cout)
        ws = jnp.pad(ws, ((0, Cin_p - Cin), (0, Cp - Cout))).astype(bf16)
        kern = functools.partial(_conv1_proj_kernel, k=K, stride=s, pad=p,
                                 cin_p=Cin_p, l1=L1, lsc=Lsc)
        blocks = [((1, Lp1, Cin), bf16), ((K * Cin_p, Cp), bf16), ((Cin_p, Cp), bf16),
                  ((1, L1, Cp), bf16), ((1, 2, Cp), f32),
                  ((1, Lsc, Cp), bf16), ((1, 2, Cp), f32)]
        y1, st1, ysc, stsc = pl.pallas_call(
            kern,
            out_shape=(jax.ShapeDtypeStruct((B, L1, Cp), bf16),
                       jax.ShapeDtypeStruct((B, 2, Cp), f32),
                       jax.ShapeDtypeStruct((B, Lsc, Cp), bf16),
                       jax.ShapeDtypeStruct((B, 2, Cp), f32)),
            grid=(B,),
            in_specs=[pl.BlockSpec((1, Lp1, Cin), lambda b: (b, 0, 0)),
                      pl.BlockSpec((K * Cin_p, Cp), lambda b: (0, 0)),
                      pl.BlockSpec((Cin_p, Cp), lambda b: (0, 0))],
            out_specs=(pl.BlockSpec((1, L1, Cp), lambda b: (b, 0, 0)),
                       pl.BlockSpec((1, 2, Cp), lambda b: (b, 0, 0)),
                       pl.BlockSpec((1, Lsc, Cp), lambda b: (b, 0, 0)),
                       pl.BlockSpec((1, 2, Cp), lambda b: (b, 0, 0))),
            compiler_params=_cparams(_block_bytes(*blocks)),
        )(xp, w1, ws)
        asc, bsc = _bn_coeffs(stsc, B * Lsc, params["gs"], params["bes"], Cp)
    else:
        kern = functools.partial(_conv1_kernel, k=K, stride=s, cin_p=Cin_p, l1=L1)
        blocks = [((1, Lp1, Cin), bf16), ((K * Cin_p, Cp), bf16),
                  ((1, L1, Cp), bf16), ((1, 2, Cp), f32)]
        y1, st1 = pl.pallas_call(
            kern,
            out_shape=(jax.ShapeDtypeStruct((B, L1, Cp), bf16),
                       jax.ShapeDtypeStruct((B, 2, Cp), f32)),
            grid=(B,),
            in_specs=[pl.BlockSpec((1, Lp1, Cin), lambda b: (b, 0, 0)),
                      pl.BlockSpec((K * Cin_p, Cp), lambda b: (0, 0))],
            out_specs=(pl.BlockSpec((1, L1, Cp), lambda b: (b, 0, 0)),
                       pl.BlockSpec((1, 2, Cp), lambda b: (b, 0, 0))),
            compiler_params=_cparams(_block_bytes(*blocks)),
        )(xp, w1)

    a1, b1 = _bn_coeffs(st1, B * L1, params["g1"], params["be1"], Cp)

    # ---- stage B: fused BN1-apply + ReLU prologue + conv2 + BN2 partials ----
    kern2 = functools.partial(_conv2_kernel, k=K, stride=s, pad=p, cp=Cp, l2=L2)
    blocks = [((1, L1, Cp), bf16), ((1, Cp), f32), ((1, Cp), f32), ((K * Cp, Cp), bf16),
              ((1, L2, Cp), bf16), ((1, 2, Cp), f32)]
    y2, st2 = pl.pallas_call(
        kern2,
        out_shape=(jax.ShapeDtypeStruct((B, L2, Cp), bf16),
                   jax.ShapeDtypeStruct((B, 2, Cp), f32)),
        grid=(B,),
        in_specs=[pl.BlockSpec((1, L1, Cp), lambda b: (b, 0, 0)),
                  vec_spec, vec_spec,
                  pl.BlockSpec((K * Cp, Cp), lambda b: (0, 0))],
        out_specs=(pl.BlockSpec((1, L2, Cp), lambda b: (b, 0, 0)),
                   pl.BlockSpec((1, 2, Cp), lambda b: (b, 0, 0))),
        compiler_params=_cparams(_block_bytes(*blocks)),
    )(y1, a1, b1, w2)
    a2, b2 = _bn_coeffs(st2, B * L2, params["g2"], params["be2"], Cp)

    # ---- stage C: BN2 apply + shortcut + residual add + ReLU (Cout-wide output) ----
    if has_proj:
        kern3 = functools.partial(_bn_add_relu_proj_kernel, cout=Cout)
        blocks = [((1, L2, Cp), bf16), ((1, L2, Cp), bf16)] \
            + [((1, Cp), f32)] * 4 + [((1, L2, Cout), f32)]
        out_blc = pl.pallas_call(
            kern3,
            out_shape=jax.ShapeDtypeStruct((B, L2, Cout), f32),
            grid=(B,),
            in_specs=[pl.BlockSpec((1, L2, Cp), lambda b: (b, 0, 0)),
                      pl.BlockSpec((1, L2, Cp), lambda b: (b, 0, 0)),
                      vec_spec, vec_spec, vec_spec, vec_spec],
            out_specs=pl.BlockSpec((1, L2, Cout), lambda b: (b, 0, 0)),
            compiler_params=_cparams(_block_bytes(*blocks)),
        )(y2, ysc, a2, b2, asc, bsc)
    else:
        kern3 = functools.partial(_bn_add_relu_id_kernel, cout=Cout, pad=p, l2=L2)
        blocks = [((1, L2, Cp), bf16), ((1, Lp1, Cin), bf16),
                  ((1, Cp), f32), ((1, Cp), f32), ((1, L2, Cout), f32)]
        out_blc = pl.pallas_call(
            kern3,
            out_shape=jax.ShapeDtypeStruct((B, L2, Cout), f32),
            grid=(B,),
            in_specs=[pl.BlockSpec((1, L2, Cp), lambda b: (b, 0, 0)),
                      pl.BlockSpec((1, Lp1, Cin), lambda b: (b, 0, 0)),
                      vec_spec, vec_spec],
            out_specs=pl.BlockSpec((1, L2, Cout), lambda b: (b, 0, 0)),
            compiler_params=_cparams(_block_bytes(*blocks)),
        )(y2, xp, a2, b2)

    return jnp.transpose(out_blc, (0, 2, 1))          # back to the module's (B, Cout, L_out)


# ------------------------- pure-JAX f32 reference (NCL) -------------------------
def ref_forward(x, prm, *, kernel_size, stride, padding):
    def conv(x, w, b, s, pd):
        y = lax.conv_general_dilated(x, w, (s,), [(pd, pd)],
                                     dimension_numbers=('NCH', 'OIH', 'NCH'))
        return y + b[None, :, None]

    def bn(x, g, be):
        m = jnp.mean(x, axis=(0, 2), keepdims=True)
        v = jnp.mean((x - m) ** 2, axis=(0, 2), keepdims=True)
        return (x - m) * lax.rsqrt(v + EPS) * g[None, :, None] + be[None, :, None]

    out = conv(x, prm["w1"], prm["b1"], stride, padding)
    out = jnp.maximum(bn(out, prm["g1"], prm["be1"]), 0.0)
    out = conv(out, prm["w2"], prm["b2"], stride, padding)
    out = bn(out, prm["g2"], prm["be2"])
    Cout, Cin = prm["w1"].shape[0], prm["w1"].shape[1]
    if stride != 1 or Cin != Cout:
        sc = bn(conv(x, prm["ws"], prm["bs"], stride, 0), prm["gs"], prm["bes"])
    else:
        sc = x
    return jnp.maximum(out + sc, 0.0)


def make_params(key, Cin, Cout, K):
    ks = jax.random.split(key, 12)
    return {
        "w1":  0.2 * jax.random.normal(ks[0], (Cout, Cin, K), jnp.float32),
        "b1":  0.1 * jax.random.normal(ks[1], (Cout,), jnp.float32),
        "g1":  1.0 + 0.1 * jax.random.normal(ks[2], (Cout,), jnp.float32),
        "be1": 0.1 * jax.random.normal(ks[3], (Cout,), jnp.float32),
        "w2":  0.2 * jax.random.normal(ks[4], (Cout, Cout, K), jnp.float32),
        "b2":  0.1 * jax.random.normal(ks[5], (Cout,), jnp.float32),
        "g2":  1.0 + 0.1 * jax.random.normal(ks[6], (Cout,), jnp.float32),
        "be2": 0.1 * jax.random.normal(ks[7], (Cout,), jnp.float32),
        "ws":  0.2 * jax.random.normal(ks[8], (Cout, Cin, 1), jnp.float32),
        "bs":  0.1 * jax.random.normal(ks[9], (Cout,), jnp.float32),
        "gs":  1.0 + 0.1 * jax.random.normal(ks[10], (Cout,), jnp.float32),
        "bes": 0.1 * jax.random.normal(ks[11], (Cout,), jnp.float32),
    }


if __name__ == "__main__":
    key = jax.random.PRNGKey(0)
    configs = [
        dict(B=2, Cin=4, Cout=8, L=16, K=3, stride=1, pad=1),    # projection shortcut
        dict(B=2, Cin=8, Cout=8, L=16, K=3, stride=1, pad=1),    # identity shortcut
        dict(B=4, Cin=4, Cout=8, L=160, K=3, stride=1, pad=1),   # larger per-step blocks
    ]
    for i, cfg in enumerate(configs):
        kp, kx = jax.random.split(jax.random.fold_in(key, i))
        params = make_params(kp, cfg["Cin"], cfg["Cout"], cfg["K"])
        x = jax.random.normal(kx, (cfg["B"], cfg["Cin"], cfg["L"]), jnp.float32)

        fwd = jax.jit(functools.partial(resblock1d_forward, kernel_size=cfg["K"],
                                        stride=cfg["stride"], padding=cfg["pad"]))
        out = jax.block_until_ready(fwd(x, params))

        ref = ref_forward(x, params, kernel_size=cfg["K"], stride=cfg["stride"],
                          padding=cfg["pad"])
        assert out.shape == ref.shape, (out.shape, ref.shape)
        # bf16 MXU inputs + bf16 intermediate streams (f32 accumulation / BN math)
        # vs. the pure-f32 reference.
        err = jnp.max(jnp.abs(out - ref))
        assert jnp.allclose(out, ref, atol=3e-2, rtol=3e-2), \
            f"config {i}: max abs err = {err}"

    print("KERNEL_OK")
</pallas_src>

<mosaic_0001>
module attributes {stable_mosaic.version = 11 : i64} {
  func.func @_conv1_proj_kernel(%arg0: i32, %arg1: memref<1x18x4xbf16, #tpu.memory_space<vmem>>, %arg2: memref<384x128xbf16, #tpu.memory_space<vmem>>, %arg3: memref<128x128xbf16, #tpu.memory_space<vmem>>, %arg4: memref<1x16x128xbf16, #tpu.memory_space<vmem>>, %arg5: memref<1x2x128xf32, #tpu.memory_space<vmem>>, %arg6: memref<1x16x128xbf16, #tpu.memory_space<vmem>>, %arg7: memref<1x2x128xf32, #tpu.memory_space<vmem>>) attributes {dimension_semantics = [#tpu.dimension_semantics<parallel>], iteration_bounds = array<i64: 2>, scalar_prefetch = 0 : i64, scratch_operands = 0 : i64, tpu.core_type = #tpu.core_type<tc>, window_params = [{transform_indices = @transform_0, window_bounds = array<i64: 1, 18, 4>}, {pipeline_mode = #tpu.pipeline_mode<synchronous>, transform_indices = @transform_1, window_bounds = array<i64: 384, 128>}, {pipeline_mode = #tpu.pipeline_mode<synchronous>, transform_indices = @transform_2, window_bounds = array<i64: 128, 128>}, {transform_indices = @transform_3, window_bounds = array<i64: 1, 16, 128>}, {transform_indices = @transform_4, window_bounds = array<i64: 1, 2, 128>}, {transform_indices = @transform_5, window_bounds = array<i64: 1, 16, 128>}, {transform_indices = @transform_6, window_bounds = array<i64: 1, 2, 128>}]} {
    %c0 = arith.constant 0 : index
    %c0_0 = arith.constant 0 : index
    %c0_1 = arith.constant 0 : index
    %0 = vector.load %arg1[%c0, %c0_0, %c0_1] : memref<1x18x4xbf16, #tpu.memory_space<vmem>>, vector<1x18x4xbf16>
    %1 = vector.shape_cast %0 : vector<1x18x4xbf16> to vector<18x4xbf16>
    %2 = arith.extf %1 : vector<18x4xbf16> to vector<18x4xf32>
    %cst = arith.constant 0.000000e+00 : f32
    %3 = vector.broadcast %cst : f32 to vector<18x124xf32>
    %4 = tpu.concatenate %2, %3 in 1 : vector<18x4xf32>, vector<18x124xf32> -> vector<18x128xf32>
    %c0_2 = arith.constant 0 : index
    %c0_3 = arith.constant 0 : index
    %5 = vector.load %arg2[%c0_2, %c0_3] : memref<384x128xbf16, #tpu.memory_space<vmem>>, vector<384x128xbf16>
    %6 = vector.extract_strided_slice %4 {offsets = [0, 0], sizes = [16, 128], strides = [1, 1]} : vector<18x128xf32> to vector<16x128xf32>
    %7 = arith.truncf %6 : vector<16x128xf32> to vector<16x128xbf16>
    %8 = vector.extract_strided_slice %5 {offsets = [0, 0], sizes = [128, 128], strides = [1, 1]} : vector<384x128xbf16> to vector<128x128xbf16>
    %cst_4 = arith.constant dense<0.000000e+00> : vector<16x128xf32>
    %9 = tpu.matmul %7, %8, %cst_4 {dimension_numbers = #tpu.dot_dimension_numbers<[1], [0], [0], [1], [0, 0, 1, 1], [], []>} : vector<16x128xbf16>, vector<128x128xbf16>, vector<16x128xf32> -> vector<16x128xf32>
    %10 = vector.extract_strided_slice %4 {offsets = [1, 0], sizes = [16, 128], strides = [1, 1]} : vector<18x128xf32> to vector<16x128xf32>
    %11 = arith.truncf %10 : vector<16x128xf32> to vector<16x128xbf16>
    %12 = vector.extract_strided_slice %5 {offsets = [128, 0], sizes = [128, 128], strides = [1, 1]} : vector<384x128xbf16> to vector<128x128xbf16>
    %cst_5 = arith.constant dense<0.000000e+00> : vector<16x128xf32>
    %13 = tpu.matmul %11, %12, %cst_5 {dimension_numbers = #tpu.dot_dimension_numbers<[1], [0], [0], [1], [0, 0, 1, 1], [], []>} : vector<16x128xbf16>, vector<128x128xbf16>, vector<16x128xf32> -> vector<16x128xf32>
    %14 = arith.addf %9, %13 : vector<16x128xf32>
    %15 = vector.extract_strided_slice %4 {offsets = [2, 0], sizes = [16, 128], strides = [1, 1]} : vector<18x128xf32> to vector<16x128xf32>
    %16 = arith.truncf %15 : vector<16x128xf32> to vector<16x128xbf16>
    %17 = vector.extract_strided_slice %5 {offsets = [256, 0], sizes = [128, 128], strides = [1, 1]} : vector<384x128xbf16> to vector<128x128xbf16>
    %cst_6 = arith.constant dense<0.000000e+00> : vector<16x128xf32>
    %18 = tpu.matmul %16, %17, %cst_6 {dimension_numbers = #tpu.dot_dimension_numbers<[1], [0], [0], [1], [0, 0, 1, 1], [], []>} : vector<16x128xbf16>, vector<128x128xbf16>, vector<16x128xf32> -> vector<16x128xf32>
    %19 = arith.addf %14, %18 : vector<16x128xf32>
    %20 = arith.truncf %19 : vector<16x128xf32> to vector<16x128xbf16>
    %c0_7 = arith.constant 0 : index
    %c0_8 = arith.constant 0 : index
    %c0_9 = arith.constant 0 : index
    %21 = vector.load %arg4[%c0_7, %c0_8, %c0_9] : memref<1x16x128xbf16, #tpu.memory_space<vmem>>, vector<1x16x128xbf16>
    %22 = vector.shape_cast %21 : vector<1x16x128xbf16> to vector<16x128xbf16>
    %23 = vector.shape_cast %20 : vector<16x128xbf16> to vector<1x16x128xbf16>
    tpu.vector_store %arg4[%c0_7, %c0_8, %c0_9], %23 {strides = array<i32>} : memref<1x16x128xbf16, #tpu.memory_space<vmem>>, vector<1x16x128xbf16>,
    %cst_10 = arith.constant dense<0.000000e+00> : vector<128xf32>
    %24 = vector.multi_reduction <add>, %19, %cst_10 [0] : vector<16x128xf32> to vector<128xf32>
    %25 = vector.shape_cast %24 : vector<128xf32> to vector<1x128xf32>
    %26 = arith.mulf %19, %19 : vector<16x128xf32>
    %cst_11 = arith.constant dense<0.000000e+00> : vector<128xf32>
    %27 = vector.multi_reduction <add>, %26, %cst_11 [0] : vector<16x128xf32> to vector<128xf32>
    %28 = vector.shape_cast %27 : vector<128xf32> to vector<1x128xf32>
    %29 = tpu.concatenate %25, %28 in 0 : vector<1x128xf32>, vector<1x128xf32> -> vector<2x128xf32>
    %c0_12 = arith.constant 0 : index
    %c0_13 = arith.constant 0 : index
    %c0_14 = arith.constant 0 : index
    %30 = vector.load %arg5[%c0_12, %c0_13, %c0_14] : memref<1x2x128xf32, #tpu.memory_space<vmem>>, vector<1x2x128xf32>
    %31 = vector.shape_cast %30 : vector<1x2x128xf32> to vector<2x128xf32>
    %32 = vector.shape_cast %29 : vector<2x128xf32> to vector<1x2x128xf32>
    tpu.vector_store %arg5[%c0_12, %c0_13, %c0_14], %32 {strides = array<i32>} : memref<1x2x128xf32, #tpu.memory_space<vmem>>, vector<1x2x128xf32>,
    %33 = vector.extract_strided_slice %4 {offsets = [1, 0], sizes = [16, 128], strides = [1, 1]} : vector<18x128xf32> to vector<16x128xf32>
    %34 = arith.truncf %33 : vector<16x128xf32> to vector<16x128xbf16>
    %c0_15 = arith.constant 0 : index
    %c0_16 = arith.constant 0 : index
    %35 = vector.load %arg3[%c0_15, %c0_16] : memref<128x128xbf16, #tpu.memory_space<vmem>>, vector<128x128xbf16>
    %cst_17 = arith.constant dense<0.000000e+00> : vector<16x128xf32>
    %36 = tpu.matmul %34, %35, %cst_17 {dimension_numbers = #tpu.dot_dimension_numbers<[1], [0], [0], [1], [0, 0, 1, 1], [], []>} : vector<16x128xbf16>, vector<128x128xbf16>, vector<16x128xf32> -> vector<16x128xf32>
    %37 = arith.truncf %36 : vector<16x128xf32> to vector<16x128xbf16>
    %c0_18 = arith.constant 0 : index
    %c0_19 = arith.constant 0 : index
    %c0_20 = arith.constant 0 : index
    %38 = vector.load %arg6[%c0_18, %c0_19, %c0_20] : memref<1x16x128xbf16, #tpu.memory_space<vmem>>, vector<1x16x128xbf16>
    %39 = vector.shape_cast %38 : vector<1x16x128xbf16> to vector<16x128xbf16>
    %40 = vector.shape_cast %37 : vector<16x128xbf16> to vector<1x16x128xbf16>
    tpu.vector_store %arg6[%c0_18, %c0_19, %c0_20], %40 {strides = array<i32>} : memref<1x16x128xbf16, #tpu.memory_space<vmem>>, vector<1x16x128xbf16>,
    %cst_21 = arith.constant dense<0.000000e+00> : vector<128xf32>
    %41 = vector.multi_reduction <add>, %36, %cst_21 [0] : vector<16x128xf32> to vector<128xf32>
    %42 = vector.shape_cast %41 : vector<128xf32> to vector<1x128xf32>
    %43 = arith.mulf %36, %36 : vector<16x128xf32>
    %cst_22 = arith.constant dense<0.000000e+00> : vector<128xf32>
    %44 = vector.multi_reduction <add>, %43, %cst_22 [0] : vector<16x128xf32> to vector<128xf32>
    %45 = vector.shape_cast %44 : vector<128xf32> to vector<1x128xf32>
    %46 = tpu.concatenate %42, %45 in 0 : vector<1x128xf32>, vector<1x128xf32> -> vector<2x128xf32>
    %c0_23 = arith.constant 0 : index
    %c0_24 = arith.constant 0 : index
    %c0_25 = arith.constant 0 : index
    %47 = vector.load %arg7[%c0_23, %c0_24, %c0_25] : memref<1x2x128xf32, #tpu.memory_space<vmem>>, vector<1x2x128xf32>
    %48 = vector.shape_cast %47 : vector<1x2x128xf32> to vector<2x128xf32>
    %49 = vector.shape_cast %46 : vector<2x128xf32> to vector<1x2x128xf32>
    tpu.vector_store %arg7[%c0_23, %c0_24, %c0_25], %49 {strides = array<i32>} : memref<1x2x128xf32, #tpu.memory_space<vmem>>, vector<1x2x128xf32>,
    return
  }
  func.func @transform_0(%arg0: i32) -> (i32, i32, i32) {
    %c0_i32 = arith.constant 0 : i32
    %c0_i32_0 = arith.constant 0 : i32
    %c0_i32_1 = arith.constant 0 : i32
    return %arg0, %c0_i32, %c0_i32_0 : i32, i32, i32
  }
  func.func @transform_1(%arg0: i32) -> (i32, i32) {
    %c0_i32 = arith.constant 0 : i32
    %c0_i32_0 = arith.constant 0 : i32
    %c0_i32_1 = arith.constant 0 : i32
    return %c0_i32, %c0_i32_0 : i32, i32
  }
  func.func @transform_2(%arg0: i32) -> (i32, i32) {
    %c0_i32 = arith.constant 0 : i32
    %c0_i32_0 = arith.constant 0 : i32
    %c0_i32_1 = arith.constant 0 : i32
    return %c0_i32, %c0_i32_0 : i32, i32
  }
  func.func @transform_3(%arg0: i32) -> (i32, i32, i32) {
    %c0_i32 = arith.constant 0 : i32
    %c0_i32_0 = arith.constant 0 : i32
    %c0_i32_1 = arith.constant 0 : i32
    return %arg0, %c0_i32, %c0_i32_0 : i32, i32, i32
  }
  func.func @transform_4(%arg0: i32) -> (i32, i32, i32) {
    %c0_i32 = arith.constant 0 : i32
    %c0_i32_0 = arith.constant 0 : i32
    %c0_i32_1 = arith.constant 0 : i32
    return %arg0, %c0_i32, %c0_i32_0 : i32, i32, i32
  }
  func.func @transform_5(%arg0: i32) -> (i32, i32, i32) {
    %c0_i32 = arith.constant 0 : i32
    %c0_i32_0 = arith.constant 0 : i32
    %c0_i32_1 = arith.constant 0 : i32
    return %arg0, %c0_i32, %c0_i32_0 : i32, i32, i32
  }
  func.func @transform_6(%arg0: i32) -> (i32, i32, i32) {
    %c0_i32 = arith.constant 0 : i32
    %c0_i32_0 = arith.constant 0 : i32
    %c0_i32_1 = arith.constant 0 : i32
    return %arg0, %c0_i32, %c0_i32_0 : i32, i32, i32
  }
}

module attributes {stable_mosaic.version = 11 : i64} {
  func.func @_conv2_kernel(%arg0: i32, %arg1: memref<1x16x128xbf16, #tpu.memory_space<vmem>>, %arg2: memref<1x128xf32, #tpu.memory_space<vmem>>, %arg3: memref<1x128xf32, #tpu.memory_space<vmem>>, %arg4: memref<384x128xbf16, #tpu.memory_space<vmem>>, %arg5: memref<1x16x128xbf16, #tpu.memory_space<vmem>>, %arg6: memref<1x2x128xf32, #tpu.memory_space<vmem>>) attributes {dimension_semantics = [#tpu.dimension_semantics<parallel>], iteration_bounds = array<i64: 2>, scalar_prefetch = 0 : i64, scratch_operands = 0 : i64, tpu.core_type = #tpu.core_type<tc>, window_params = [{transform_indices = @transform_0, window_bounds = array<i64: 1, 16, 128>}, {pipeline_mode = #tpu.pipeline_mode<synchronous>, transform_indices = @transform_1, window_bounds = array<i64: 1, 128>}, {pipeline_mode = #tpu.pipeline_mode<synchronous>, transform_indices = @transform_2, window_bounds = array<i64: 1, 128>}, {pipeline_mode = #tpu.pipeline_mode<synchronous>, transform_indices = @transform_3, window_bounds = array<i64: 384, 128>}, {transform_indices = @transform_4, window_bounds = array<i64: 1, 16, 128>}, {transform_indices = @transform_5, window_bounds = array<i64: 1, 2, 128>}]} {
    %c0 = arith.constant 0 : index
    %c0_0 = arith.constant 0 : index
    %c0_1 = arith.constant 0 : index
    %0 = vector.load %arg1[%c0, %c0_0, %c0_1] : memref<1x16x128xbf16, #tpu.memory_space<vmem>>, vector<1x16x128xbf16>
    %1 = vector.shape_cast %0 : vector<1x16x128xbf16> to vector<16x128xbf16>
    %2 = arith.extf %1 : vector<16x128xbf16> to vector<16x128xf32>
    %c0_2 = arith.constant 0 : index
    %c0_3 = arith.constant 0 : index
    %3 = vector.load %arg2[%c0_2, %c0_3] : memref<1x128xf32, #tpu.memory_space<vmem>>, vector<1x128xf32>
    %4 = vector.broadcast %3 : vector<1x128xf32> to vector<16x128xf32>
    %5 = arith.mulf %2, %4 : vector<16x128xf32>
    %c0_4 = arith.constant 0 : index
    %c0_5 = arith.constant 0 : index
    %6 = vector.load %arg3[%c0_4, %c0_5] : memref<1x128xf32, #tpu.memory_space<vmem>>, vector<1x128xf32>
    %7 = vector.broadcast %6 : vector<1x128xf32> to vector<16x128xf32>
    %8 = arith.addf %5, %7 : vector<16x128xf32>
    %cst = arith.constant 0.000000e+00 : f32
    %9 = vector.broadcast %cst : f32 to vector<16x128xf32>
    %10 = arith.maximumf %8, %9 : vector<16x128xf32>
    %cst_6 = arith.constant 0.000000e+00 : f32
    %11 = vector.broadcast %cst_6 : f32 to vector<1x128xf32>
    %12 = tpu.concatenate %11, %10, %11 in 0 : vector<1x128xf32>, vector<16x128xf32>, vector<1x128xf32> -> vector<18x128xf32>
    %c0_7 = arith.constant 0 : index
    %c0_8 = arith.constant 0 : index
    %13 = vector.load %arg4[%c0_7, %c0_8] : memref<384x128xbf16, #tpu.memory_space<vmem>>, vector<384x128xbf16>
    %14 = vector.extract_strided_slice %12 {offsets = [0, 0], sizes = [16, 128], strides = [1, 1]} : vector<18x128xf32> to vector<16x128xf32>
    %15 = arith.truncf %14 : vector<16x128xf32> to vector<16x128xbf16>
    %16 = vector.extract_strided_slice %13 {offsets = [0, 0], sizes = [128, 128], strides = [1, 1]} : vector<384x128xbf16> to vector<128x128xbf16>
    %cst_9 = arith.constant dense<0.000000e+00> : vector<16x128xf32>
    %17 = tpu.matmul %15, %16, %cst_9 {dimension_numbers = #tpu.dot_dimension_numbers<[1], [0], [0], [1], [0, 0, 1, 1], [], []>} : vector<16x128xbf16>, vector<128x128xbf16>, vector<16x128xf32> -> vector<16x128xf32>
    %18 = vector.extract_strided_slice %12 {offsets = [1, 0], sizes = [16, 128], strides = [1, 1]} : vector<18x128xf32> to vector<16x128xf32>
    %19 = arith.truncf %18 : vector<16x128xf32> to vector<16x128xbf16>
    %20 = vector.extract_strided_slice %13 {offsets = [128, 0], sizes = [128, 128], strides = [1, 1]} : vector<384x128xbf16> to vector<128x128xbf16>
    %cst_10 = arith.constant dense<0.000000e+00> : vector<16x128xf32>
    %21 = tpu.matmul %19, %20, %cst_10 {dimension_numbers = #tpu.dot_dimension_numbers<[1], [0], [0], [1], [0, 0, 1, 1], [], []>} : vector<16x128xbf16>, vector<128x128xbf16>, vector<16x128xf32> -> vector<16x128xf32>
    %22 = arith.addf %17, %21 : vector<16x128xf32>
    %23 = vector.extract_strided_slice %12 {offsets = [2, 0], sizes = [16, 128], strides = [1, 1]} : vector<18x128xf32> to vector<16x128xf32>
    %24 = arith.truncf %23 : vector<16x128xf32> to vector<16x128xbf16>
    %25 = vector.extract_strided_slice %13 {offsets = [256, 0], sizes = [128, 128], strides = [1, 1]} : vector<384x128xbf16> to vector<128x128xbf16>
    %cst_11 = arith.constant dense<0.000000e+00> : vector<16x128xf32>
    %26 = tpu.matmul %24, %25, %cst_11 {dimension_numbers = #tpu.dot_dimension_numbers<[1], [0], [0], [1], [0, 0, 1, 1], [], []>} : vector<16x128xbf16>, vector<128x128xbf16>, vector<16x128xf32> -> vector<16x128xf32>
    %27 = arith.addf %22, %26 : vector<16x128xf32>
    %28 = arith.truncf %27 : vector<16x128xf32> to vector<16x128xbf16>
    %c0_12 = arith.constant 0 : index
    %c0_13 = arith.constant 0 : index
    %c0_14 = arith.constant 0 : index
    %29 = vector.load %arg5[%c0_12, %c0_13, %c0_14] : memref<1x16x128xbf16, #tpu.memory_space<vmem>>, vector<1x16x128xbf16>
    %30 = vector.shape_cast %29 : vector<1x16x128xbf16> to vector<16x128xbf16>
    %31 = vector.shape_cast %28 : vector<16x128xbf16> to vector<1x16x128xbf16>
    tpu.vector_store %arg5[%c0_12, %c0_13, %c0_14], %31 {strides = array<i32>} : memref<1x16x128xbf16, #tpu.memory_space<vmem>>, vector<1x16x128xbf16>,
    %cst_15 = arith.constant dense<0.000000e+00> : vector<128xf32>
    %32 = vector.multi_reduction <add>, %27, %cst_15 [0] : vector<16x128xf32> to vector<128xf32>
    %33 = vector.shape_cast %32 : vector<128xf32> to vector<1x128xf32>
    %34 = arith.mulf %27, %27 : vector<16x128xf32>
    %cst_16 = arith.constant dense<0.000000e+00> : vector<128xf32>
    %35 = vector.multi_reduction <add>, %34, %cst_16 [0] : vector<16x128xf32> to vector<128xf32>
    %36 = vector.shape_cast %35 : vector<128xf32> to vector<1x128xf32>
    %37 = tpu.concatenate %33, %36 in 0 : vector<1x128xf32>, vector<1x128xf32> -> vector<2x128xf32>
    %c0_17 = arith.constant 0 : index
    %c0_18 = arith.constant 0 : index
    %c0_19 = arith.constant 0 : index
    %38 = vector.load %arg6[%c0_17, %c0_18, %c0_19] : memref<1x2x128xf32, #tpu.memory_space<vmem>>, vector<1x2x128xf32>
    %39 = vector.shape_cast %38 : vector<1x2x128xf32> to vector<2x128xf32>
    %40 = vector.shape_cast %37 : vector<2x128xf32> to vector<1x2x128xf32>
    tpu.vector_store %arg6[%c0_17, %c0_18, %c0_19], %40 {strides = array<i32>} : memref<1x2x128xf32, #tpu.memory_space<vmem>>, vector<1x2x128xf32>,
    return
  }
  func.func @transform_0(%arg0: i32) -> (i32, i32, i32) {
    %c0_i32 = arith.constant 0 : i32
    %c0_i32_0 = arith.constant 0 : i32
    %c0_i32_1 = arith.constant 0 : i32
    return %arg0, %c0_i32, %c0_i32_0 : i32, i32, i32
  }
  func.func @transform_1(%arg0: i32) -> (i32, i32) {
    %c0_i32 = arith.constant 0 : i32
    %c0_i32_0 = arith.constant 0 : i32
    %c0_i32_1 = arith.constant 0 : i32
    return %c0_i32, %c0_i32_0 : i32, i32
  }
  func.func @transform_2(%arg0: i32) -> (i32, i32) {
    %c0_i32 = arith.constant 0 : i32
    %c0_i32_0 = arith.constant 0 : i32
    %c0_i32_1 = arith.constant 0 : i32
    return %c0_i32, %c0_i32_0 : i32, i32
  }
  func.func @transform_3(%arg0: i32) -> (i32, i32) {
    %c0_i32 = arith.constant 0 : i32
    %c0_i32_0 = arith.constant 0 : i32
    %c0_i32_1 = arith.constant 0 : i32
    return %c0_i32, %c0_i32_0 : i32, i32
  }
  func.func @transform_4(%arg0: i32) -> (i32, i32, i32) {
    %c0_i32 = arith.constant 0 : i32
    %c0_i32_0 = arith.constant 0 : i32
    %c0_i32_1 = arith.constant 0 : i32
    return %arg0, %c0_i32, %c0_i32_0 : i32, i32, i32
  }
  func.func @transform_5(%arg0: i32) -> (i32, i32, i32) {
    %c0_i32 = arith.constant 0 : i32
    %c0_i32_0 = arith.constant 0 : i32
    %c0_i32_1 = arith.constant 0 : i32
    return %arg0, %c0_i32, %c0_i32_0 : i32, i32, i32
  }
}

module attributes {stable_mosaic.version = 11 : i64} {
  func.func @_bn_add_relu_proj_kernel(%arg0: i32, %arg1: memref<1x16x128xbf16, #tpu.memory_space<vmem>>, %arg2: memref<1x16x128xbf16, #tpu.memory_space<vmem>>, %arg3: memref<1x128xf32, #tpu.memory_space<vmem>>, %arg4: memref<1x128xf32, #tpu.memory_space<vmem>>, %arg5: memref<1x128xf32, #tpu.memory_space<vmem>>, %arg6: memref<1x128xf32, #tpu.memory_space<vmem>>, %arg7: memref<1x16x8xf32, #tpu.memory_space<vmem>>) attributes {dimension_semantics = [#tpu.dimension_semantics<parallel>], iteration_bounds = array<i64: 2>, scalar_prefetch = 0 : i64, scratch_operands = 0 : i64, tpu.core_type = #tpu.core_type<tc>, window_params = [{transform_indices = @transform_0, window_bounds = array<i64: 1, 16, 128>}, {transform_indices = @transform_1, window_bounds = array<i64: 1, 16, 128>}, {pipeline_mode = #tpu.pipeline_mode<synchronous>, transform_indices = @transform_2, window_bounds = array<i64: 1, 128>}, {pipeline_mode = #tpu.pipeline_mode<synchronous>, transform_indices = @transform_3, window_bounds = array<i64: 1, 128>}, {pipeline_mode = #tpu.pipeline_mode<synchronous>, transform_indices = @transform_4, window_bounds = array<i64: 1, 128>}, {pipeline_mode = #tpu.pipeline_mode<synchronous>, transform_indices = @transform_5, window_bounds = array<i64: 1, 128>}, {transform_indices = @transform_6, window_bounds = array<i64: 1, 16, 8>}]} {
    %c0 = arith.constant 0 : index
    %c0_0 = arith.constant 0 : index
    %c0_1 = arith.constant 0 : index
    %0 = vector.load %arg1[%c0, %c0_0, %c0_1] : memref<1x16x128xbf16, #tpu.memory_space<vmem>>, vector<1x16x128xbf16>
    %1 = vector.shape_cast %0 : vector<1x16x128xbf16> to vector<16x128xbf16>
    %2 = arith.extf %1 : vector<16x128xbf16> to vector<16x128xf32>
    %c0_2 = arith.constant 0 : index
    %c0_3 = arith.constant 0 : index
    %3 = vector.load %arg3[%c0_2, %c0_3] : memref<1x128xf32, #tpu.memory_space<vmem>>, vector<1x128xf32>
    %4 = vector.broadcast %3 : vector<1x128xf32> to vector<16x128xf32>
    %5 = arith.mulf %2, %4 : vector<16x128xf32>
    %c0_4 = arith.constant 0 : index
    %c0_5 = arith.constant 0 : index
    %6 = vector.load %arg4[%c0_4, %c0_5] : memref<1x128xf32, #tpu.memory_space<vmem>>, vector<1x128xf32>
    %7 = vector.broadcast %6 : vector<1x128xf32> to vector<16x128xf32>
    %8 = arith.addf %5, %7 : vector<16x128xf32>
    %c0_6 = arith.constant 0 : index
    %c0_7 = arith.constant 0 : index
    %c0_8 = arith.constant 0 : index
    %9 = vector.load %arg2[%c0_6, %c0_7, %c0_8] : memref<1x16x128xbf16, #tpu.memory_space<vmem>>, vector<1x16x128xbf16>
    %10 = vector.shape_cast %9 : vector<1x16x128xbf16> to vector<16x128xbf16>
    %11 = arith.extf %10 : vector<16x128xbf16> to vector<16x128xf32>
    %c0_9 = arith.constant 0 : index
    %c0_10 = arith.constant 0 : index
    %12 = vector.load %arg5[%c0_9, %c0_10] : memref<1x128xf32, #tpu.memory_space<vmem>>, vector<1x128xf32>
    %13 = vector.broadcast %12 : vector<1x128xf32> to vector<16x128xf32>
    %14 = arith.mulf %11, %13 : vector<16x128xf32>
    %c0_11 = arith.constant 0 : index
    %c0_12 = arith.constant 0 : index
    %15 = vector.load %arg6[%c0_11, %c0_12] : memref<1x128xf32, #tpu.memory_space<vmem>>, vector<1x128xf32>
    %16 = vector.broadcast %15 : vector<1x128xf32> to vector<16x128xf32>
    %17 = arith.addf %14, %16 : vector<16x128xf32>
    %18 = arith.addf %8, %17 : vector<16x128xf32>
    %cst = arith.constant 0.000000e+00 : f32
    %19 = vector.broadcast %cst : f32 to vector<16x128xf32>
    %20 = arith.maximumf %18, %19 : vector<16x128xf32>
    %21 = vector.extract_strided_slice %20 {offsets = [0, 0], sizes = [16, 8], strides = [1, 1]} : vector<16x128xf32> to vector<16x8xf32>
    %c0_13 = arith.constant 0 : index
    %c0_14 = arith.constant 0 : index
    %c0_15 = arith.constant 0 : index
    %22 = vector.load %arg7[%c0_13, %c0_14, %c0_15] : memref<1x16x8xf32, #tpu.memory_space<vmem>>, vector<1x16x8xf32>
    %23 = vector.shape_cast %22 : vector<1x16x8xf32> to vector<16x8xf32>
    %24 = vector.shape_cast %21 : vector<16x8xf32> to vector<1x16x8xf32>
    tpu.vector_store %arg7[%c0_13, %c0_14, %c0_15], %24 {strides = array<i32>} : memref<1x16x8xf32, #tpu.memory_space<vmem>>, vector<1x16x8xf32>,
    return
  }
  func.func @transform_0(%arg0: i32) -> (i32, i32, i32) {
    %c0_i32 = arith.constant 0 : i32
    %c0_i32_0 = arith.constant 0 : i32
    %c0_i32_1 = arith.constant 0 : i32
    return %arg0, %c0_i32, %c0_i32_0 : i32, i32, i32
  }
  func.func @transform_1(%arg0: i32) -> (i32, i32, i32) {
    %c0_i32 = arith.constant 0 : i32
    %c0_i32_0 = arith.constant 0 : i32
    %c0_i32_1 = arith.constant 0 : i32
    return %arg0, %c0_i32, %c0_i32_0 : i32, i32, i32
  }
  func.func @transform_2(%arg0: i32) -> (i32, i32) {
    %c0_i32 = arith.constant 0 : i32
    %c0_i32_0 = arith.constant 0 : i32
    %c0_i32_1 = arith.constant 0 : i32
    return %c0_i32, %c0_i32_0 : i32, i32
  }
  func.func @transform_3(%arg0: i32) -> (i32, i32) {
    %c0_i32 = arith.constant 0 : i32
    %c0_i32_0 = arith.constant 0 : i32
    %c0_i32_1 = arith.constant 0 : i32
    return %c0_i32, %c0_i32_0 : i32, i32
  }
  func.func @transform_4(%arg0: i32) -> (i32, i32) {
    %c0_i32 = arith.constant 0 : i32
    %c0_i32_0 = arith.constant 0 : i32
    %c0_i32_1 = arith.constant 0 : i32
    return %c0_i32, %c0_i32_0 : i32, i32
  }
  func.func @transform_5(%arg0: i32) -> (i32, i32) {
    %c0_i32 = arith.constant 0 : i32
    %c0_i32_0 = arith.constant 0 : i32
    %c0_i32_1 = arith.constant 0 : i32
    return %c0_i32, %c0_i32_0 : i32, i32
  }
  func.func @transform_6(%arg0: i32) -> (i32, i32, i32) {
    %c0_i32 = arith.constant 0 : i32
    %c0_i32_0 = arith.constant 0 : i32
    %c0_i32_1 = arith.constant 0 : i32
    return %arg0, %c0_i32, %c0_i32_0 : i32, i32, i32
  }
}

</mosaic_0001>

<llo_original>
// kernel: resblock1d_forward.5
$region0: #{resblock1d_forward.5}
  #allocation0 [shape = 'u32[]', space=smem, size = 0x4, offset = 0x4, fixed_abs, tag = 'smem constant byte address 0x4 - core index']
  #allocation1 [shape = 'u32[72,128]{1,0:T(1,128)}', space=vmem, size = 0x9000, scoped, tag = 'internal scratch']
  %s0 = inlined_call_operand.vmem [shape: bf16[2,16,128], index: 0, kind: input, shape index: {}]
  %s1 = inlined_call_operand.vmem [shape: bf16[2,16,128], index: 1, kind: input, shape index: {}]
  %s2 = inlined_call_operand.vmem [shape: f32[1,128], index: 2, kind: input, shape index: {}]
  %s3 = inlined_call_operand.vmem [shape: f32[1,128], index: 3, kind: input, shape index: {}]
  %s4 = inlined_call_operand.vmem [shape: f32[1,128], index: 4, kind: input, shape index: {}]
  %s5 = inlined_call_operand.vmem [shape: f32[1,128], index: 5, kind: input, shape index: {}]
  %s6 = inlined_call_operand.vmem [shape: f32[2,16,8], index: 6, kind: output, shape index: {}]
  %s7 = sld [smem:[#allocation0]]
  $region57: #{resblock1d_forward.5} parent=0
    _
  %s9 = ssub.s32 1, %s7
  %s10 = scalar_select 0, %s9, %s7
  loop: start=0, step=1, limit=4
  $region2: #{resblock1d_forward.5} parent=0 // loop_pre_header
    _
  $region3: #{resblock1d_forward.5} parent=0 // loop_header
    %s12 = sphi 0, %s16
    %p13 = scmp.ge.s32.totalorder %s12, 4
    %s22 = sphi 0, %s24
    %s25 = sphi 0, %s22
    %s26 = sphi 0, %s25
    %s42 = sphi 0, %s26
    %s48 = sphi 0, %s50
    %s51 = sphi 0, %s48
    %s52 = sphi 0, %s51
    %s68 = sphi 0, %s52
    %s72 = sphi 0, %s72
    %s74 = sphi 0, %s72
    %s75 = sphi 0, %s74
    %s89 = sphi 0, %s75
    %s93 = sphi 0, %s93
    %s95 = sphi 0, %s93
    %s96 = sphi 0, %s95
    %s110 = sphi 0, %s96
    %s114 = sphi 0, %s114
    %s116 = sphi 0, %s114
    %s117 = sphi 0, %s116
    %s131 = sphi 0, %s117
    %s135 = sphi 0, %s135
    %s137 = sphi 0, %s135
    %s138 = sphi 0, %s137
    %s152 = sphi 0, %s138
    %s158 = sphi 0, %s160
    %s161 = sphi 0, %s158
    %s162 = sphi 0, %s161
    %s178 = sphi 0, %s162
  $region4: #{resblock1d_forward.5} parent=0 // loop_header_branch
    %15 = sbr.rel (%p13) target = $region8
  $region5: #{resblock1d_forward.5} parent=0 // loop_body
    %s17 = ssub.s32 %s12, 1
    %s18 = ssub.s32 %s12, 2
    %s19 = sadd.s32 %s12, 1
    %s20 = ssub.s32 %s12, %s19
    %p21 = scmp.eq.s32.totalorder %s20, 0
    %s23 = sadd.s32 %s22, 1
    %s24 = scalar_select %p21, %s22, %s23
    %p27 = pneg %p21
    %p28 = scmp.eq.s32.totalorder %s12, 1
    %p29 = por %p27, %p28
    %p30 = scmp.ne.s32.totalorder %s22, %s25
    %p31 = scmp.eq.s32.totalorder %s12, 0
    %p32 = por %p30, %p31
    %p33 = scmp.ne.s32.totalorder %s22, %s25
    %p34 = scmp.eq.s32.totalorder %s17, 1
    %p35 = por %p33, %p34
    %p36 = scmp.ne.s32.totalorder %s25, %s26
    %p37 = scmp.eq.s32.totalorder %s17, 0
    %p38 = por %p36, %p37
    %p39 = scmp.ne.s32.totalorder %s25, %s26
    %p40 = scmp.eq.s32.totalorder %s18, 1
    %p41 = por %p39, %p40
    %p43 = scmp.ne.s32.totalorder %s26, %s42
    %p44 = scmp.eq.s32.totalorder %s18, 0
    %p45 = por %p43, %p44
    %s46 = ssub.s32 %s12, %s19
    %p47 = scmp.eq.s32.totalorder %s46, 0
    %s49 = sadd.s32 %s48, 1
    %s50 = scalar_select %p47, %s48, %s49
    %p53 = pneg %p47
    %p54 = scmp.eq.s32.totalorder %s12, 1
    %p55 = por %p53, %p54
    %p56 = scmp.ne.s32.totalorder %s48, %s51
    %p57 = scmp.eq.s32.totalorder %s12, 0
    %p58 = por %p56, %p57
    %p59 = scmp.ne.s32.totalorder %s48, %s51
    %p60 = scmp.eq.s32.totalorder %s17, 1
    %p61 = por %p59, %p60
    %p62 = scmp.ne.s32.totalorder %s51, %s52
    %p63 = scmp.eq.s32.totalorder %s17, 0
    %p64 = por %p62, %p63
    %p65 = scmp.ne.s32.totalorder %s51, %s52
    %p66 = scmp.eq.s32.totalorder %s18, 1
    %p67 = por %p65, %p66
    %p69 = scmp.ne.s32.totalorder %s52, %s68
    %p70 = scmp.eq.s32.totalorder %s18, 0
    %p71 = por %p69, %p70
    %s73 = sadd.s32 %s72, 1
    %p76 = scmp.eq.s32.totalorder %s12, 1
    %p77 = scmp.ne.s32.totalorder %s72, %s74
    %p78 = scmp.eq.s32.totalorder %s12, 0
    %p79 = por %p77, %p78
    %p80 = scmp.ne.s32.totalorder %s72, %s74
    %p81 = scmp.eq.s32.totalorder %s17, 1
    %p82 = por %p80, %p81
    %p83 = scmp.ne.s32.totalorder %s74, %s75
    %p84 = scmp.eq.s32.totalorder %s17, 0
    %p85 = por %p83, %p84
    %p86 = scmp.ne.s32.totalorder %s74, %s75
    %p87 = scmp.eq.s32.totalorder %s18, 1
    %p88 = por %p86, %p87
    %p90 = scmp.ne.s32.totalorder %s75, %s89
    %p91 = scmp.eq.s32.totalorder %s18, 0
    %p92 = por %p90, %p91
    %s94 = sadd.s32 %s93, 1
    %p97 = scmp.eq.s32.totalorder %s12, 1
    %p98 = scmp.ne.s32.totalorder %s93, %s95
    %p99 = scmp.eq.s32.totalorder %s12, 0
    %p100 = por %p98, %p99
    %p101 = scmp.ne.s32.totalorder %s93, %s95
    %p102 = scmp.eq.s32.totalorder %s17, 1
    %p103 = por %p101, %p102
    %p104 = scmp.ne.s32.totalorder %s95, %s96
    %p105 = scmp.eq.s32.totalorder %s17, 0
    %p106 = por %p104, %p105
    %p107 = scmp.ne.s32.totalorder %s95, %s96
    %p108 = scmp.eq.s32.totalorder %s18, 1
    %p109 = por %p107, %p108
    %p111 = scmp.ne.s32.totalorder %s96, %s110
    %p112 = scmp.eq.s32.totalorder %s18, 0
    %p113 = por %p111, %p112
    %s115 = sadd.s32 %s114, 1
    %p118 = scmp.eq.s32.totalorder %s12, 1
    %p119 = scmp.ne.s32.totalorder %s114, %s116
    %p120 = scmp.eq.s32.totalorder %s12, 0
    %p121 = por %p119, %p120
    %p122 = scmp.ne.s32.totalorder %s114, %s116
    %p123 = scmp.eq.s32.totalorder %s17, 1
    %p124 = por %p122, %p123
    %p125 = scmp.ne.s32.totalorder %s116, %s117
    %p126 = scmp.eq.s32.totalorder %s17, 0
    %p127 = por %p125, %p126
    %p128 = scmp.ne.s32.totalorder %s116, %s117
    %p129 = scmp.eq.s32.totalorder %s18, 1
    %p130 = por %p128, %p129
    %p132 = scmp.ne.s32.totalorder %s117, %s131
    %p133 = scmp.eq.s32.totalorder %s18, 0
    %p134 = por %p132, %p133
    %s136 = sadd.s32 %s135, 1
    %p139 = scmp.eq.s32.totalorder %s12, 1
    %p140 = scmp.ne.s32.totalorder %s135, %s137
    %p141 = scmp.eq.s32.totalorder %s12, 0
    %p142 = por %p140, %p141
    %p143 = scmp.ne.s32.totalorder %s135, %s137
    %p144 = scmp.eq.s32.totalorder %s17, 1
    %p145 = por %p143, %p144
    %p146 = scmp.ne.s32.totalorder %s137, %s138
    %p147 = scmp.eq.s32.totalorder %s17, 0
    %p148 = por %p146, %p147
    %p149 = scmp.ne.s32.totalorder %s137, %s138
    %p150 = scmp.eq.s32.totalorder %s18, 1
    %p151 = por %p149, %p150
    %p153 = scmp.ne.s32.totalorder %s138, %s152
    %p154 = scmp.eq.s32.totalorder %s18, 0
    %p155 = por %p153, %p154
    %s156 = ssub.s32 %s12, %s19
    %p157 = scmp.eq.s32.totalorder %s156, 0
    %s159 = sadd.s32 %s158, 1
    %s160 = scalar_select %p157, %s158, %s159
    %p163 = pneg %p157
    %p164 = scmp.eq.s32.totalorder %s12, 1
    %p165 = por %p163, %p164
    %p166 = scmp.ne.s32.totalorder %s158, %s161
    %p167 = scmp.eq.s32.totalorder %s12, 0
    %p168 = por %p166, %p167
    %p169 = scmp.ne.s32.totalorder %s158, %s161
    %p170 = scmp.eq.s32.totalorder %s17, 1
    %p171 = por %p169, %p170
    %p172 = scmp.ne.s32.totalorder %s161, %s162
    %p173 = scmp.eq.s32.totalorder %s17, 0
    %p174 = por %p172, %p173
    %p175 = scmp.ne.s32.totalorder %s161, %s162
    %p176 = scmp.eq.s32.totalorder %s18, 1
    %p177 = por %p175, %p176
    %p179 = scmp.ne.s32.totalorder %s162, %s178
    %p180 = scmp.eq.s32.totalorder %s18, 0
    %p181 = por %p179, %p180
    %p182 = scmp.le.s32.totalorder 1, %s12
    %p183 = scmp.lt.s32.totalorder %s12, 3
    %p184 = pnand %p182, %p183
    %p185 = pneg %p184
    // Predicated region
    $region9: #{resblock1d_forward.5} parent=5 // pred_check
      _
    $region10: #{resblock1d_forward.5} parent=5 // pred_check_branch
      %187 = sbr.rel (%p184) target = $region12
    $region11: #{resblock1d_forward.5} parent=5 // pred_region
      %s188 = ssub.s32 %s12, 1
      // Predicated region
      $region13: #{resblock1d_forward.5} parent=11 // pred_check
        %p189 = pneg %p85
      $region14: #{resblock1d_forward.5} parent=11 // pred_check_branch
        %191 = sbr.rel (%p189) target = $region16
      $region15: #{resblock1d_forward.5} parent=11 // pred_region
        _
      $region16: #{resblock1d_forward.5} parent=11 // pred_fallthru
        _
      // Predicated region
      $region17: #{resblock1d_forward.5} parent=11 // pred_check
        %p192 = pneg %p106
      $region18: #{resblock1d_forward.5} parent=11 // pred_check_branch
        %194 = sbr.rel (%p192) target = $region20
      $region19: #{resblock1d_forward.5} parent=11 // pred_region
        _
      $region20: #{resblock1d_forward.5} parent=11 // pred_fallthru
        _
      // Predicated region
      $region21: #{resblock1d_forward.5} parent=11 // pred_check
        %p195 = pneg %p127
      $region22: #{resblock1d_forward.5} parent=11 // pred_check_branch
        %197 = sbr.rel (%p195) target = $region24
      $region23: #{resblock1d_forward.5} parent=11 // pred_region
        _
      $region24: #{resblock1d_forward.5} parent=11 // pred_fallthru
        _
      // Predicated region
      $region25: #{resblock1d_forward.5} parent=11 // pred_check
        %p198 = pneg %p148
      $region26: #{resblock1d_forward.5} parent=11 // pred_check_branch
        %200 = sbr.rel (%p198) target = $region28
      $region27: #{resblock1d_forward.5} parent=11 // pred_region
        _
      $region28: #{resblock1d_forward.5} parent=11 // pred_fallthru
        _
    $region12: #{resblock1d_forward.5} parent=5 // pred_fallthru
      _
    %p201 = scmp.lt.s32.totalorder %s12, 2
    // Predicated region
    $region29: #{resblock1d_forward.5} parent=5 // pred_check
      %p202 = pneg %p201
    $region30: #{resblock1d_forward.5} parent=5 // pred_check_branch
      %204 = sbr.rel (%p202) target = $region32
    $region31: #{resblock1d_forward.5} parent=5 // pred_region
      // Predicated region
      $region33: #{resblock1d_forward.5} parent=31 // pred_check
        %p205 = pneg %p32
      $region34: #{resblock1d_forward.5} parent=31 // pred_check_branch
        %207 = sbr.rel (%p205) target = $region36
      $region35: #{resblock1d_forward.5} parent=31 // pred_region
        %p208 = scmp.lt.s32.totalorder %s12, 1
        %s209 = scalar_select %p208, %s12, 1
        %s210 = smul.addr %s209, 2
        %s211 = smul.addr %s210, 4
        %s212 = scalar_lea.vmem %s0, %s211
      $region36: #{resblock1d_forward.5} parent=31 // pred_fallthru
        _
      // Predicated region
      $region37: #{resblock1d_forward.5} parent=31 // pred_check
        %p213 = pneg %p58
      $region38: #{resblock1d_forward.5} parent=31 // pred_check_branch
        %215 = sbr.rel (%p213) target = $region40
      $region39: #{resblock1d_forward.5} parent=31 // pred_region
        %p216 = scmp.lt.s32.totalorder %s12, 1
        %s217 = scalar_select %p216, %s12, 1
        %s218 = smul.addr %s217, 2
        %s219 = smul.addr %s218, 4
        %s220 = scalar_lea.vmem %s1, %s219
      $region40: #{resblock1d_forward.5} parent=31 // pred_fallthru
        _
    $region32: #{resblock1d_forward.5} parent=5 // pred_fallthru
      _
    %p221 = scmp.le.s32.totalorder 1, %s12
    %p222 = scmp.lt.s32.totalorder %s12, 3
    %p223 = pnand %p221, %p222
    %p224 = pneg %p223
    // Predicated region
    $region41: #{resblock1d_forward.5} parent=5 // pred_check
      _
    $region42: #{resblock1d_forward.5} parent=5 // pred_check_branch
      %226 = sbr.rel (%p223) target = $region44
    $region43: #{resblock1d_forward.5} parent=5 // pred_region
      %s227 = ssub.s32 %s12, 1
      %p228 = scmp.lt.s32.totalorder %s17, 1
      %s229 = scalar_select %p228, %s17, 1
      %s230 = smul.addr %s229, 2
      %s231 = smul.addr %s230, 4
      %s232 = scalar_lea.vmem %s0, %s231
      %p233 = pneg %p38
      %p234 = pneg %p35
      %p235 = scmp.lt.s32.totalorder %s17, 1
      %s236 = scalar_select %p235, %s17, 1
      %s237 = smul.addr %s236, 2
      %s238 = smul.addr %s237, 4
      %s239 = scalar_lea.vmem %s1, %s238
      %p240 = pneg %p64
      %p241 = pneg %p61
      %p242 = pneg %p85
      %p243 = pneg %p82
      %p244 = pneg %p106
      %p245 = pneg %p103
      %p246 = pneg %p127
      %p247 = pneg %p124
      %p248 = pneg %p148
      %p249 = pneg %p145
      %p250 = pneg %p174
      %p251 = pneg %p171
      %p252 = scmp.lt.s32.totalorder %s17, 1
      %s253 = scalar_select %p252, %s17, 1
      %s254 = smul.addr %s253, 2
      %s255 = smul.addr %s254, 8
      %s256 = scalar_lea.vmem %s6, %s255
      %p257 = scmp.lt.s32.totalorder %s17, 1
      %s258 = scalar_select %p257, %s17, 1
      %s259 = smul.addr %s258, 2
      %s260 = smul.addr %s259, 4
      %s261 = scalar_lea.vmem %s0, %s260
      %p262 = scmp.lt.s32.totalorder %s17, 1
      %s263 = scalar_select %p262, %s17, 1
      %s264 = smul.addr %s263, 2
      %s265 = smul.addr %s264, 4
      %s266 = scalar_lea.vmem %s1, %s265
      %p267 = scmp.lt.s32.totalorder %s17, 1
      %s268 = scalar_select %p267, %s17, 1
      %s269 = smul.addr %s268, 2
      %s270 = smul.addr %s269, 8
      %s271 = scalar_lea.vmem %s6, %s270
      %v272 = vld [vmem:[%s261] sm:$0xf]
      %v273 = vld [vmem:[%s261 + $0x4] sm:$0xf]
      %v274 = vunpack.c.l.bf16 %v272
      %v275 = vunpack.c.l.bf16 %v273
      %v276 = vld [vmem:[%s2] sm:$0x1]
      %v278 = vperm.slane %v276, 0
      %v280 = vmul.f32 %v274, %v278
      %v281 = vmul.f32 %v275, %v278
      %v282 = vld [vmem:[%s3] sm:$0x1]
      %v284 = vperm.slane %v282, 0
      %v286 = vadd.f32 %v280, %v284
      %v287 = vadd.f32 %v281, %v284
      %v288 = vld [vmem:[%s266] sm:$0xf]
      %v289 = vld [vmem:[%s266 + $0x4] sm:$0xf]
      %v290 = vunpack.c.l.bf16 %v288
      %v291 = vunpack.c.l.bf16 %v289
      %v292 = vld [vmem:[%s4] sm:$0x1]
      %v294 = vperm.slane %v292, 0
      %v296 = vmul.f32 %v290, %v294
      %v297 = vmul.f32 %v291, %v294
      %v298 = vld [vmem:[%s5] sm:$0x1]
      %v300 = vperm.slane %v298, 0
      %v302 = vadd.f32 %v296, %v300
      %v303 = vadd.f32 %v297, %v300
      %v304 = vadd.f32 %v286, %v302
      %v305 = vadd.f32 %v287, %v303
      %v306 = vmax.f32 %v304, 0.0
      %v307 = vmax.f32 %v305, 0.0
      %vm308 = vcmask 64512
      %309 = vst.msk [vmem:[%s271] sm:$0xff] %vm308, %v306
      %310 = vst.msk [vmem:[%s271 + $0x8] sm:$0xff] %vm308, %v307
      %p311 = scmp.lt.s32.totalorder %s17, 1
      %s312 = scalar_select %p311, %s17, 1
      %s313 = smul.addr %s312, 2
      %s314 = smul.addr %s313, 8
      %s315 = scalar_lea.vmem %s6, %s314
      // Predicated region
      $region45: #{resblock1d_forward.5} parent=43 // pred_check
        %p316 = pneg %p171
      $region46: #{resblock1d_forward.5} parent=43 // pred_check_branch
        %318 = sbr.rel (%p316) target = $region48
      $region47: #{resblock1d_forward.5} parent=43 // pred_region
        _
      $region48: #{resblock1d_forward.5} parent=43 // pred_fallthru
        _
    $region44: #{resblock1d_forward.5} parent=5 // pred_fallthru
      _
    %p319 = scmp.le.s32.totalorder 2, %s12
    // Predicated region
    $region49: #{resblock1d_forward.5} parent=5 // pred_check
      %p320 = pneg %p319
    $region50: #{resblock1d_forward.5} parent=5 // pred_check_branch
      %322 = sbr.rel (%p320) target = $region52
    $region51: #{resblock1d_forward.5} parent=5 // pred_region
      %s323 = ssub.s32 %s12, 2
      // Predicated region
      $region53: #{resblock1d_forward.5} parent=51 // pred_check
        %p324 = pneg %p177
      $region54: #{resblock1d_forward.5} parent=51 // pred_check_branch
        %326 = sbr.rel (%p324) target = $region56
      $region55: #{resblock1d_forward.5} parent=51 // pred_region
        %p327 = scmp.lt.s32.totalorder %s18, 1
        %s328 = scalar_select %p327, %s18, 1
        %s329 = smul.addr %s328, 2
        %s330 = smul.addr %s329, 8
        %s331 = scalar_lea.vmem %s6, %s330
      $region56: #{resblock1d_forward.5} parent=51 // pred_fallthru
        _
    $region52: #{resblock1d_forward.5} parent=5 // pred_fallthru
      _
  $region6: #{resblock1d_forward.5} parent=0 // loop_footer
    %s16 = sadd.s32 1, %s12
  $region7: #{resblock1d_forward.5} parent=0 // loop_footer_branch
    %11 = sbr.rel target = $region3
  $region8: #{resblock1d_forward.5} parent=0 // loop_exit
    _

// kernel: resblock1d_forward.4
$region0: #{resblock1d_forward.4}
  #allocation0 [shape = 'u32[]', space=smem, size = 0x4, offset = 0x4, fixed_abs, tag = 'smem constant byte address 0x4 - core index']
  #allocation1 [shape = 'u32[72,128]{1,0:T(1,128)}', space=vmem, size = 0x9000, scoped, tag = 'internal scratch']
  %s0 = inlined_call_operand.vmem [shape: bf16[2,16,128], index: 0, kind: input, shape index: {}]
  %s1 = inlined_call_operand.vmem [shape: f32[1,128], index: 1, kind: input, shape index: {}]
  %s2 = inlined_call_operand.vmem [shape: f32[1,128], index: 2, kind: input, shape index: {}]
  %s3 = inlined_call_operand.vmem [shape: bf16[384,128], index: 3, kind: input, shape index: {}]
  %s4 = inlined_call_operand.vmem [shape: bf16[2,16,128], index: 4, kind: output, shape index: {0}]
  %s5 = inlined_call_operand.vmem [shape: f32[2,2,128], index: 5, kind: output, shape index: {1}]
  %6 = xla_tuple %s4, %s5
  %s7 = sld [smem:[#allocation0]]
  $region57: #{resblock1d_forward.4} parent=0
    _
  %s9 = ssub.s32 1, %s7
  %s10 = scalar_select 0, %s9, %s7
  loop: start=0, step=1, limit=4
  $region2: #{resblock1d_forward.4} parent=0 // loop_pre_header
    _
  $region3: #{resblock1d_forward.4} parent=0 // loop_header
    %s12 = sphi 0, %s16
    %p13 = scmp.ge.s32.totalorder %s12, 4
    %s22 = sphi 0, %s24
    %s25 = sphi 0, %s22
    %s26 = sphi 0, %s25
    %s42 = sphi 0, %s26
    %s46 = sphi 0, %s46
    %s48 = sphi 0, %s46
    %s49 = sphi 0, %s48
    %s63 = sphi 0, %s49
    %s67 = sphi 0, %s67
    %s69 = sphi 0, %s67
    %s70 = sphi 0, %s69
    %s84 = sphi 0, %s70
    %s88 = sphi 0, %s88
    %s90 = sphi 0, %s88
    %s91 = sphi 0, %s90
    %s105 = sphi 0, %s91
    %s111 = sphi 0, %s113
    %s114 = sphi 0, %s111
    %s115 = sphi 0, %s114
    %s131 = sphi 0, %s115
    %s137 = sphi 0, %s139
    %s140 = sphi 0, %s137
    %s141 = sphi 0, %s140
    %s157 = sphi 0, %s141
  $region4: #{resblock1d_forward.4} parent=0 // loop_header_branch
    %15 = sbr.rel (%p13) target = $region8
  $region5: #{resblock1d_forward.4} parent=0 // loop_body
    %s17 = ssub.s32 %s12, 1
    %s18 = ssub.s32 %s12, 2
    %s19 = sadd.s32 %s12, 1
    %s20 = ssub.s32 %s12, %s19
    %p21 = scmp.eq.s32.totalorder %s20, 0
    %s23 = sadd.s32 %s22, 1
    %s24 = scalar_select %p21, %s22, %s23
    %p27 = pneg %p21
    %p28 = scmp.eq.s32.totalorder %s12, 1
    %p29 = por %p27, %p28
    %p30 = scmp.ne.s32.totalorder %s22, %s25
    %p31 = scmp.eq.s32.totalorder %s12, 0
    %p32 = por %p30, %p31
    %p33 = scmp.ne.s32.totalorder %s22, %s25
    %p34 = scmp.eq.s32.totalorder %s17, 1
    %p35 = por %p33, %p34
    %p36 = scmp.ne.s32.totalorder %s25, %s26
    %p37 = scmp.eq.s32.totalorder %s17, 0
    %p38 = por %p36, %p37
    %p39 = scmp.ne.s32.totalorder %s25, %s26
    %p40 = scmp.eq.s32.totalorder %s18, 1
    %p41 = por %p39, %p40
    %p43 = scmp.ne.s32.totalorder %s26, %s42
    %p44 = scmp.eq.s32.totalorder %s18, 0
    %p45 = por %p43, %p44
    %s47 = sadd.s32 %s46, 1
    %p50 = scmp.eq.s32.totalorder %s12, 1
    %p51 = scmp.ne.s32.totalorder %s46, %s48
    %p52 = scmp.eq.s32.totalorder %s12, 0
    %p53 = por %p51, %p52
    %p54 = scmp.ne.s32.totalorder %s46, %s48
    %p55 = scmp.eq.s32.totalorder %s17, 1
    %p56 = por %p54, %p55
    %p57 = scmp.ne.s32.totalorder %s48, %s49
    %p58 = scmp.eq.s32.totalorder %s17, 0
    %p59 = por %p57, %p58
    %p60 = scmp.ne.s32.totalorder %s48, %s49
    %p61 = scmp.eq.s32.totalorder %s18, 1
    %p62 = por %p60, %p61
    %p64 = scmp.ne.s32.totalorder %s49, %s63
    %p65 = scmp.eq.s32.totalorder %s18, 0
    %p66 = por %p64, %p65
    %s68 = sadd.s32 %s67, 1
    %p71 = scmp.eq.s32.totalorder %s12, 1
    %p72 = scmp.ne.s32.totalorder %s67, %s69
    %p73 = scmp.eq.s32.totalorder %s12, 0
    %p74 = por %p72, %p73
    %p75 = scmp.ne.s32.totalorder %s67, %s69
    %p76 = scmp.eq.s32.totalorder %s17, 1
    %p77 = por %p75, %p76
    %p78 = scmp.ne.s32.totalorder %s69, %s70
    %p79 = scmp.eq.s32.totalorder %s17, 0
    %p80 = por %p78, %p79
    %p81 = scmp.ne.s32.totalorder %s69, %s70
    %p82 = scmp.eq.s32.totalorder %s18, 1
    %p83 = por %p81, %p82
    %p85 = scmp.ne.s32.totalorder %s70, %s84
    %p86 = scmp.eq.s32.totalorder %s18, 0
    %p87 = por %p85, %p86
    %s89 = sadd.s32 %s88, 1
    %p92 = scmp.eq.s32.totalorder %s12, 1
    %p93 = scmp.ne.s32.totalorder %s88, %s90
    %p94 = scmp.eq.s32.totalorder %s12, 0
    %p95 = por %p93, %p94
    %p96 = scmp.ne.s32.totalorder %s88, %s90
    %p97 = scmp.eq.s32.totalorder %s17, 1
    %p98 = por %p96, %p97
    %p99 = scmp.ne.s32.totalorder %s90, %s91
    %p100 = scmp.eq.s32.totalorder %s17, 0
    %p101 = por %p99, %p100
    %p102 = scmp.ne.s32.totalorder %s90, %s91
    %p103 = scmp.eq.s32.totalorder %s18, 1
    %p104 = por %p102, %p103
    %p106 = scmp.ne.s32.totalorder %s91, %s105
    %p107 = scmp.eq.s32.totalorder %s18, 0
    %p108 = por %p106, %p107
    %s109 = ssub.s32 %s12, %s19
    %p110 = scmp.eq.s32.totalorder %s109, 0
    %s112 = sadd.s32 %s111, 1
    %s113 = scalar_select %p110, %s111, %s112
    %p116 = pneg %p110
    %p117 = scmp.eq.s32.totalorder %s12, 1
    %p118 = por %p116, %p117
    %p119 = scmp.ne.s32.totalorder %s111, %s114
    %p120 = scmp.eq.s32.totalorder %s12, 0
    %p121 = por %p119, %p120
    %p122 = scmp.ne.s32.totalorder %s111, %s114
    %p123 = scmp.eq.s32.totalorder %s17, 1
    %p124 = por %p122, %p123
    %p125 = scmp.ne.s32.totalorder %s114, %s115
    %p126 = scmp.eq.s32.totalorder %s17, 0
    %p127 = por %p125, %p126
    %p128 = scmp.ne.s32.totalorder %s114, %s115
    %p129 = scmp.eq.s32.totalorder %s18, 1
    %p130 = por %p128, %p129
    %p132 = scmp.ne.s32.totalorder %s115, %s131
    %p133 = scmp.eq.s32.totalorder %s18, 0
    %p134 = por %p132, %p133
    %s135 = ssub.s32 %s12, %s19
    %p136 = scmp.eq.s32.totalorder %s135, 0
    %s138 = sadd.s32 %s137, 1
    %s139 = scalar_select %p136, %s137, %s138
    %p142 = pneg %p136
    %p143 = scmp.eq.s32.totalorder %s12, 1
    %p144 = por %p142, %p143
    %p145 = scmp.ne.s32.totalorder %s137, %s140
    %p146 = scmp.eq.s32.totalorder %s12, 0
    %p147 = por %p145, %p146
    %p148 = scmp.ne.s32.totalorder %s137, %s140
    %p149 = scmp.eq.s32.totalorder %s17, 1
    %p150 = por %p148, %p149
    %p151 = scmp.ne.s32.totalorder %s140, %s141
    %p152 = scmp.eq.s32.totalorder %s17, 0
    %p153 = por %p151, %p152
    %p154 = scmp.ne.s32.totalorder %s140, %s141
    %p155 = scmp.eq.s32.totalorder %s18, 1
    %p156 = por %p154, %p155
    %p158 = scmp.ne.s32.totalorder %s141, %s157
    %p159 = scmp.eq.s32.totalorder %s18, 0
    %p160 = por %p158, %p159
    %p161 = scmp.le.s32.totalorder 1, %s12
    %p162 = scmp.lt.s32.totalorder %s12, 3
    %p163 = pnand %p161, %p162
    %p164 = pneg %p163
    // Predicated region
    $region9: #{resblock1d_forward.4} parent=5 // pred_check
      _
    $region10: #{resblock1d_forward.4} parent=5 // pred_check_branch
      %166 = sbr.rel (%p163) target = $region12
    $region11: #{resblock1d_forward.4} parent=5 // pred_region
      %s167 = ssub.s32 %s12, 1
      // Predicated region
      $region13: #{resblock1d_forward.4} parent=11 // pred_check
        %p168 = pneg %p59
      $region14: #{resblock1d_forward.4} parent=11 // pred_check_branch
        %170 = sbr.rel (%p168) target = $region16
      $region15: #{resblock1d_forward.4} parent=11 // pred_region
        _
      $region16: #{resblock1d_forward.4} parent=11 // pred_fallthru
        _
      // Predicated region
      $region17: #{resblock1d_forward.4} parent=11 // pred_check
        %p171 = pneg %p80
      $region18: #{resblock1d_forward.4} parent=11 // pred_check_branch
        %173 = sbr.rel (%p171) target = $region20
      $region19: #{resblock1d_forward.4} parent=11 // pred_region
        _
      $region20: #{resblock1d_forward.4} parent=11 // pred_fallthru
        _
      // Predicated region
      $region21: #{resblock1d_forward.4} parent=11 // pred_check
        %p174 = pneg %p101
      $region22: #{resblock1d_forward.4} parent=11 // pred_check_branch
        %176 = sbr.rel (%p174) target = $region24
      $region23: #{resblock1d_forward.4} parent=11 // pred_region
        _
      $region24: #{resblock1d_forward.4} parent=11 // pred_fallthru
        _
    $region12: #{resblock1d_forward.4} parent=5 // pred_fallthru
      _
    %p177 = scmp.lt.s32.totalorder %s12, 2
    // Predicated region
    $region25: #{resblock1d_forward.4} parent=5 // pred_check
      %p178 = pneg %p177
    $region26: #{resblock1d_forward.4} parent=5 // pred_check_branch
      %180 = sbr.rel (%p178) target = $region28
    $region27: #{resblock1d_forward.4} parent=5 // pred_region
      // Predicated region
      $region29: #{resblock1d_forward.4} parent=27 // pred_check
        %p181 = pneg %p32
      $region30: #{resblock1d_forward.4} parent=27 // pred_check_branch
        %183 = sbr.rel (%p181) target = $region32
      $region31: #{resblock1d_forward.4} parent=27 // pred_region
        %p184 = scmp.lt.s32.totalorder %s12, 1
        %s185 = scalar_select %p184, %s12, 1
        %s186 = smul.addr %s185, 2
        %s187 = smul.addr %s186, 4
        %s188 = scalar_lea.vmem %s0, %s187
      $region32: #{resblock1d_forward.4} parent=27 // pred_fallthru
        _
    $region28: #{resblock1d_forward.4} parent=5 // pred_fallthru
      _
    %p189 = scmp.le.s32.totalorder 1, %s12
    %p190 = scmp.lt.s32.totalorder %s12, 3
    %p191 = pnand %p189, %p190
    %p192 = pneg %p191
    // Predicated region
    $region33: #{resblock1d_forward.4} parent=5 // pred_check
      _
    $region34: #{resblock1d_forward.4} parent=5 // pred_check_branch
      %194 = sbr.rel (%p191) target = $region36
    $region35: #{resblock1d_forward.4} parent=5 // pred_region
      %s195 = ssub.s32 %s12, 1
      %p196 = scmp.lt.s32.totalorder %s17, 1
      %s197 = scalar_select %p196, %s17, 1
      %s198 = smul.addr %s197, 2
      %s199 = smul.addr %s198, 4
      %s200 = scalar_lea.vmem %s0, %s199
      %p201 = pneg %p38
      %p202 = pneg %p35
      %p203 = pneg %p59
      %p204 = pneg %p56
      %p205 = pneg %p80
      %p206 = pneg %p77
      %p207 = pneg %p101
      %p208 = pneg %p98
      %p209 = pneg %p127
      %p210 = pneg %p124
      %p211 = scmp.lt.s32.totalorder %s17, 1
      %s212 = scalar_select %p211, %s17, 1
      %s213 = smul.addr %s212, 2
      %s214 = smul.addr %s213, 4
      %s215 = scalar_lea.vmem %s4, %s214
      %p216 = pneg %p153
      %p217 = pneg %p150
      %p218 = scmp.lt.s32.totalorder %s17, 1
      %s219 = scalar_select %p218, %s17, 1
      %s220 = smul.addr %s219, 2
      %s221 = scalar_lea.vmem %s5, %s220
      %p222 = scmp.lt.s32.totalorder %s17, 1
      %s223 = scalar_select %p222, %s17, 1
      %s224 = smul.addr %s223, 2
      %s225 = smul.addr %s224, 4
      %s226 = scalar_lea.vmem %s0, %s225
      %p227 = scmp.lt.s32.totalorder %s17, 1
      %s228 = scalar_select %p227, %s17, 1
      %s229 = smul.addr %s228, 2
      %s230 = smul.addr %s229, 4
      %s231 = scalar_lea.vmem %s4, %s230
      %p232 = scmp.lt.s32.totalorder %s17, 1
      %s233 = scalar_select %p232, %s17, 1
      %s234 = smul.addr %s233, 2
      %s235 = scalar_lea.vmem %s5, %s234
      %v236 = vld [vmem:[%s226] sm:$0xf]
      %v237 = vld [vmem:[%s226 + $0x4] sm:$0xf]
      %v238 = vunpack.c.l.bf16 %v236
      %v239 = vunpack.c.l.bf16 %v237
      %v240 = vld [vmem:[%s1] sm:$0x1]
      %v242 = vperm.slane %v240, 0
      %v244 = vmul.f32 %v238, %v242
      %v245 = vmul.f32 %v239, %v242
      %v246 = vld [vmem:[%s2] sm:$0x1]
      %v248 = vperm.slane %v246, 0
      %v250 = vadd.f32 %v244, %v248
      %v251 = vadd.f32 %v245, %v248
      %v252 = vmax.f32 %v250, 0.0
      %v253 = vmax.f32 %v251, 0.0
      %vm256 = vcmask 1040384
      %v257 = vrot.slane %v252, 7
      %v258 = vrot.slane %v253, 7
      %v259 = vsel %vm256, %v257, %v258
      %v263 = vsel %vm256, 0.0, %v257
      %v264 = vsel %vm256, %v258, 0.0
      %v265 = vld [vmem:[%s3] sm:$0xf]
      %v266 = vld [vmem:[%s3 + $0x4] sm:$0xf]
      %v267 = vld [vmem:[%s3 + $0x8] sm:$0xf]
      %v268 = vld [vmem:[%s3 + $0xc] sm:$0xf]
      %v269 = vld [vmem:[%s3 + $0x10] sm:$0xf]
      %v270 = vld [vmem:[%s3 + $0x14] sm:$0xf]
      %v271 = vld [vmem:[%s3 + $0x18] sm:$0xf]
      %v272 = vld [vmem:[%s3 + $0x1c] sm:$0xf]
      %v273 = vld [vmem:[%s3 + $0x20] sm:$0xf]
      %v274 = vld [vmem:[%s3 + $0x24] sm:$0xf]
      %v275 = vld [vmem:[%s3 + $0x28] sm:$0xf]
      %v276 = vld [vmem:[%s3 + $0x2c] sm:$0xf]
      %v277 = vld [vmem:[%s3 + $0x30] sm:$0xf]
      %v278 = vld [vmem:[%s3 + $0x34] sm:$0xf]
      %v279 = vld [vmem:[%s3 + $0x38] sm:$0xf]
      %v280 = vld [vmem:[%s3 + $0x3c] sm:$0xf]
      %v281 = vld [vmem:[%s3 + $0x40] sm:$0xf]
      %v282 = vld [vmem:[%s3 + $0x44] sm:$0xf]
      %v283 = vld [vmem:[%s3 + $0x48] sm:$0xf]
      %v284 = vld [vmem:[%s3 + $0x4c] sm:$0xf]
      %v285 = vld [vmem:[%s3 + $0x50] sm:$0xf]
      %v286 = vld [vmem:[%s3 + $0x54] sm:$0xf]
      %v287 = vld [vmem:[%s3 + $0x58] sm:$0xf]
      %v288 = vld [vmem:[%s3 + $0x5c] sm:$0xf]
      %v289 = vld [vmem:[%s3 + $0x60] sm:$0xf]
      %v290 = vld [vmem:[%s3 + $0x64] sm:$0xf]
      %v291 = vld [vmem:[%s3 + $0x68] sm:$0xf]
      %v292 = vld [vmem:[%s3 + $0x6c] sm:$0xf]
      %v293 = vld [vmem:[%s3 + $0x70] sm:$0xf]
      %v294 = vld [vmem:[%s3 + $0x74] sm:$0xf]
      %v295 = vld [vmem:[%s3 + $0x78] sm:$0xf]
      %v296 = vld [vmem:[%s3 + $0x7c] sm:$0xf]
      %v297 = vld [vmem:[%s3 + $0x80] sm:$0xf]
      %v298 = vld [vmem:[%s3 + $0x84] sm:$0xf]
      %v299 = vld [vmem:[%s3 + $0x88] sm:$0xf]
      %v300 = vld [vmem:[%s3 + $0x8c] sm:$0xf]
      %v301 = vld [vmem:[%s3 + $0x90] sm:$0xf]
      %v302 = vld [vmem:[%s3 + $0x94] sm:$0xf]
      %v303 = vld [vmem:[%s3 + $0x98] sm:$0xf]
      %v304 = vld [vmem:[%s3 + $0x9c] sm:$0xf]
      %v305 = vld [vmem:[%s3 + $0xa0] sm:$0xf]
      %v306 = vld [vmem:[%s3 + $0xa4] sm:$0xf]
      %v307 = vld [vmem:[%s3 + $0xa8] sm:$0xf]
      %v308 = vld [vmem:[%s3 + $0xac] sm:$0xf]
      %v309 = vld [vmem:[%s3 + $0xb0] sm:$0xf]
      %v310 = vld [vmem:[%s3 + $0xb4] sm:$0xf]
      %v311 = vld [vmem:[%s3 + $0xb8] sm:$0xf]
      %v312 = vld [vmem:[%s3 + $0xbc] sm:$0xf]
      %v313 = vpack.c.bf16 %v259, %v263
      %v314 = vpack.c.bf16 %v264, %v264
      %vm315 = vsmask.f32 7424
      %v317 = vshrl.u32 %v313, 16
      %v319 = vshll.u32 %v313, 16
      %v321 = vrot.slane %v319, 1
      %v322 = vor.u32 %v317, %v321
      %v324 = vshll.u32 %v314, 16
      %v326 = vrot.slane %v324, 1
      %v327 = vsel %vm315, %v322, %v326
      %v345 = vunpack.c.l.b16 %v281
      %v346 = vunpack.c.l.b16 %v282
      %v347 = vunpack.c.l.b16 %v283
      %v348 = vunpack.c.l.b16 %v284
      %v349 = vunpack.c.l.b16 %v285
      %v350 = vunpack.c.l.b16 %v286
      %v351 = vunpack.c.l.b16 %v287
      %v352 = vunpack.c.l.b16 %v288
      %v353 = vunpack.c.l.b16 %v289
      %v354 = vunpack.c.l.b16 %v290
      %v355 = vunpack.c.l.b16 %v291
      %v356 = vunpack.c.l.b16 %v292
      %v357 = vunpack.c.l.b16 %v293
      %v358 = vunpack.c.l.b16 %v294
      %v359 = vunpack.c.l.b16 %v295
      %v360 = vunpack.c.l.b16 %v296
      %v361 = vpack.c.b16 %v346, %v345
      %v362 = vpack.c.b16 %v348, %v347
      %v363 = vpack.c.b16 %v350, %v349
      %v364 = vpack.c.b16 %v352, %v351
      %v365 = vpack.c.b16 %v354, %v353
      %v366 = vpack.c.b16 %v356, %v355
      %v367 = vpack.c.b16 %v358, %v357
      %v368 = vpack.c.b16 %v360, %v359
      %377 = vmatpush.bf16.msra.mxu0 %v368
      %378 = vmatpush.bf16.msra.mxu0 %v367
      %379 = vmatpush.bf16.msra.mxu0 %v366
      %380 = vmatpush.bf16.msra.mxu0 %v365
      %381 = vmatpush.bf16.msra.mxu0 %v364
      %382 = vmatpush.bf16.msra.mxu0 %v363
      %383 = vmatpush.bf16.msra.mxu0 %v362
      %384 = vmatpush.bf16.msra.mxu0 %v361
      %385 = vmatmul.bf16.gmra.mxu0 %v327
      %v386 = vpop.f32.mrf.mxu0
      %v387 = vadd.f32 0.0, %v386
      %v388 = vpop.f32.mrf.mxu0
      %v389 = vadd.f32 0.0, %v388
      %390 = vdwg.mxu0
      %v407 = vunpack.c.l.b16 %v265
      %v408 = vunpack.c.l.b16 %v266
      %v409 = vunpack.c.l.b16 %v267
      %v410 = vunpack.c.l.b16 %v268
      %v411 = vunpack.c.l.b16 %v269
      %v412 = vunpack.c.l.b16 %v270
      %v413 = vunpack.c.l.b16 %v271
      %v414 = vunpack.c.l.b16 %v272
      %v415 = vunpack.c.l.b16 %v273
      %v416 = vunpack.c.l.b16 %v274
      %v417 = vunpack.c.l.b16 %v275
      %v418 = vunpack.c.l.b16 %v276
      %v419 = vunpack.c.l.b16 %v277
      %v420 = vunpack.c.l.b16 %v278
      %v421 = vunpack.c.l.b16 %v279
      %v422 = vunpack.c.l.b16 %v280
      %v423 = vpack.c.b16 %v408, %v407
      %v424 = vpack.c.b16 %v410, %v409
      %v425 = vpack.c.b16 %v412, %v411
      %v426 = vpack.c.b16 %v414, %v413
      %v427 = vpack.c.b16 %v416, %v415
      %v428 = vpack.c.b16 %v418, %v417
      %v429 = vpack.c.b16 %v420, %v419
      %v430 = vpack.c.b16 %v422, %v421
      %439 = vmatpush.bf16.msra.mxu0 %v430
      %440 = vmatpush.bf16.msra.mxu0 %v429
      %441 = vmatpush.bf16.msra.mxu0 %v428
      %442 = vmatpush.bf16.msra.mxu0 %v427
      %443 = vmatpush.bf16.msra.mxu0 %v426
      %444 = vmatpush.bf16.msra.mxu0 %v425
      %445 = vmatpush.bf16.msra.mxu0 %v424
      %446 = vmatpush.bf16.msra.mxu0 %v423
      %447 = vmatmul.bf16.gmra.mxu0 %v313
      %v448 = vpop.f32.mrf.mxu0
      %v449 = vadd.f32 %v387, %v448
      %v450 = vpop.f32.mrf.mxu0
      %v451 = vadd.f32 %v389, %v450
      %452 = vdwg.mxu0
      %vm455 = vcmask 1046528
      %v456 = vrot.slane %v313, 1
      %v457 = vrot.slane %v314, 1
      %v458 = vsel %vm455, %v456, %v457
      %v476 = vunpack.c.l.b16 %v297
      %v477 = vunpack.c.l.b16 %v298
      %v478 = vunpack.c.l.b16 %v299
      %v479 = vunpack.c.l.b16 %v300
      %v480 = vunpack.c.l.b16 %v301
      %v481 = vunpack.c.l.b16 %v302
      %v482 = vunpack.c.l.b16 %v303
      %v483 = vunpack.c.l.b16 %v304
      %v484 = vunpack.c.l.b16 %v305
      %v485 = vunpack.c.l.b16 %v306
      %v486 = vunpack.c.l.b16 %v307
      %v487 = vunpack.c.l.b16 %v308
      %v488 = vunpack.c.l.b16 %v309
      %v489 = vunpack.c.l.b16 %v310
      %v490 = vunpack.c.l.b16 %v311
      %v491 = vunpack.c.l.b16 %v312
      %v492 = vpack.c.b16 %v477, %v476
      %v493 = vpack.c.b16 %v479, %v478
      %v494 = vpack.c.b16 %v481, %v480
      %v495 = vpack.c.b16 %v483, %v482
      %v496 = vpack.c.b16 %v485, %v484
      %v497 = vpack.c.b16 %v487, %v486
      %v498 = vpack.c.b16 %v489, %v488
      %v499 = vpack.c.b16 %v491, %v490
      %508 = vmatpush.bf16.msra.mxu0 %v499
      %509 = vmatpush.bf16.msra.mxu0 %v498
      %510 = vmatpush.bf16.msra.mxu0 %v497
      %511 = vmatpush.bf16.msra.mxu0 %v496
      %512 = vmatpush.bf16.msra.mxu0 %v495
      %513 = vmatpush.bf16.msra.mxu0 %v494
      %514 = vmatpush.bf16.msra.mxu0 %v493
      %515 = vmatpush.bf16.msra.mxu0 %v492
      %516 = vmatmul.bf16.gmra.mxu0 %v458
      %v517 = vpop.f32.mrf.mxu0
      %v518 = vadd.f32 0.0, %v517
      %v519 = vpop.f32.mrf.mxu0
      %v520 = vadd.f32 0.0, %v519
      %521 = vdwg.mxu0
      %v522 = vadd.f32 %v449, %v518
      %v523 = vadd.f32 %v451, %v520
      %v524 = vpack.c.bf16 %v522, %v522
      %v525 = vpack.c.bf16 %v523, %v523
      %526 = vst [vmem:[%s231] sm:$0xf] %v524
      %527 = vst [vmem:[%s231 + $0x4] sm:$0xf] %v525
      %v528 = vadd.f32 %v522, %v523
      %v529 = vrot.slane %v528, 4
      %v530 = vadd.f32 %v528, %v529
      %v531 = vrot.slane %v530, 2
      %v532 = vadd.f32 %v530, %v531
      %v533 = vrot.slane %v532, 1
      %v534 = vadd.f32 %v532, %v533
      %v535 = vmul.f32 %v522, %v522
      %v536 = vmul.f32 %v523, %v523
      %v537 = vadd.f32 %v535, %v536
      %v538 = vrot.slane %v537, 4
      %v539 = vadd.f32 %v537, %v538
      %v540 = vrot.slane %v539, 2
      %v541 = vadd.f32 %v539, %v540
      %v542 = vrot.slane %v541, 1
      %v543 = vadd.f32 %v541, %v542
      %v544 = vsel %vm256, %v534, %v543
      %545 = vst [vmem:[%s235] sm:$0x3] %v544
      %p546 = scmp.lt.s32.totalorder %s17, 1
      %s547 = scalar_select %p546, %s17, 1
      %s548 = smul.addr %s547, 2
      %s549 = smul.addr %s548, 4
      %s550 = scalar_lea.vmem %s4, %s549
      %p551 = scmp.lt.s32.totalorder %s17, 1
      %s552 = scalar_select %p551, %s17, 1
      %s553 = smul.addr %s552, 2
      %s554 = scalar_lea.vmem %s5, %s553
      // Predicated region
      $region37: #{resblock1d_forward.4} parent=35 // pred_check
        %p555 = pneg %p124
      $region38: #{resblock1d_forward.4} parent=35 // pred_check_branch
        %557 = sbr.rel (%p555) target = $region40
      $region39: #{resblock1d_forward.4} parent=35 // pred_region
        _
      $region40: #{resblock1d_forward.4} parent=35 // pred_fallthru
        _
      // Predicated region
      $region41: #{resblock1d_forward.4} parent=35 // pred_check
        %p558 = pneg %p150
      $region42: #{resblock1d_forward.4} parent=35 // pred_check_branch
        %560 = sbr.rel (%p558) target = $region44
      $region43: #{resblock1d_forward.4} parent=35 // pred_region
        _
      $region44: #{resblock1d_forward.4} parent=35 // pred_fallthru
        _
    $region36: #{resblock1d_forward.4} parent=5 // pred_fallthru
      _
    %p561 = scmp.le.s32.totalorder 2, %s12
    // Predicated region
    $region45: #{resblock1d_forward.4} parent=5 // pred_check
      %p562 = pneg %p561
    $region46: #{resblock1d_forward.4} parent=5 // pred_check_branch
      %564 = sbr.rel (%p562) target = $region48
    $region47: #{resblock1d_forward.4} parent=5 // pred_region
      %s565 = ssub.s32 %s12, 2
      // Predicated region
      $region49: #{resblock1d_forward.4} parent=47 // pred_check
        %p566 = pneg %p130
      $region50: #{resblock1d_forward.4} parent=47 // pred_check_branch
        %568 = sbr.rel (%p566) target = $region52
      $region51: #{resblock1d_forward.4} parent=47 // pred_region
        %p569 = scmp.lt.s32.totalorder %s18, 1
        %s570 = scalar_select %p569, %s18, 1
        %s571 = smul.addr %s570, 2
        %s572 = smul.addr %s571, 4
        %s573 = scalar_lea.vmem %s4, %s572
      $region52: #{resblock1d_forward.4} parent=47 // pred_fallthru
        _
      // Predicated region
      $region53: #{resblock1d_forward.4} parent=47 // pred_check
        %p574 = pneg %p156
      $region54: #{resblock1d_forward.4} parent=47 // pred_check_branch
        %576 = sbr.rel (%p574) target = $region56
      $region55: #{resblock1d_forward.4} parent=47 // pred_region
        %p577 = scmp.lt.s32.totalorder %s18, 1
        %s578 = scalar_select %p577, %s18, 1
        %s579 = smul.addr %s578, 2
        %s580 = scalar_lea.vmem %s5, %s579
      $region56: #{resblock1d_forward.4} parent=47 // pred_fallthru
        _
    $region48: #{resblock1d_forward.4} parent=5 // pred_fallthru
      _
  $region6: #{resblock1d_forward.4} parent=0 // loop_footer
    %s16 = sadd.s32 1, %s12
  $region7: #{resblock1d_forward.4} parent=0 // loop_footer_branch
    %11 = sbr.rel target = $region3
  $region8: #{resblock1d_forward.4} parent=0 // loop_exit
    _

// kernel: resblock1d_forward.3
$region0: #{resblock1d_forward.3}
  #allocation0 [shape = 'u32[]', space=smem, size = 0x4, offset = 0x4, fixed_abs, tag = 'smem constant byte address 0x4 - core index']
  #allocation1 [shape = 'u32[72,128]{1,0:T(1,128)}', space=vmem, size = 0x9000, scoped, tag = 'internal scratch']
  %s0 = inlined_call_operand.vmem [shape: bf16[2,18,4], index: 0, kind: input, shape index: {}]
  %s1 = inlined_call_operand.vmem [shape: bf16[384,128], index: 1, kind: input, shape index: {}]
  %s2 = inlined_call_operand.vmem [shape: bf16[128,128], index: 2, kind: input, shape index: {}]
  %s3 = inlined_call_operand.vmem [shape: bf16[2,16,128], index: 3, kind: output, shape index: {0}]
  %s4 = inlined_call_operand.vmem [shape: f32[2,2,128], index: 4, kind: output, shape index: {1}]
  %s5 = inlined_call_operand.vmem [shape: bf16[2,16,128], index: 5, kind: output, shape index: {2}]
  %s6 = inlined_call_operand.vmem [shape: f32[2,2,128], index: 6, kind: output, shape index: {3}]
  %7 = xla_tuple %s3, %s4, %s5, %s6
  %s8 = sld [smem:[#allocation0]]
  $region69: #{resblock1d_forward.3} parent=0
    _
  %s10 = ssub.s32 1, %s8
  %s11 = scalar_select 0, %s10, %s8
  loop: start=0, step=1, limit=4
  $region2: #{resblock1d_forward.3} parent=0 // loop_pre_header
    _
  $region3: #{resblock1d_forward.3} parent=0 // loop_header
    %s13 = sphi 0, %s17
    %p14 = scmp.ge.s32.totalorder %s13, 4
    %s23 = sphi 0, %s25
    %s26 = sphi 0, %s23
    %s27 = sphi 0, %s26
    %s43 = sphi 0, %s27
    %s47 = sphi 0, %s47
    %s49 = sphi 0, %s47
    %s50 = sphi 0, %s49
    %s64 = sphi 0, %s50
    %s68 = sphi 0, %s68
    %s70 = sphi 0, %s68
    %s71 = sphi 0, %s70
    %s85 = sphi 0, %s71
    %s91 = sphi 0, %s93
    %s94 = sphi 0, %s91
    %s95 = sphi 0, %s94
    %s111 = sphi 0, %s95
    %s117 = sphi 0, %s119
    %s120 = sphi 0, %s117
    %s121 = sphi 0, %s120
    %s137 = sphi 0, %s121
    %s143 = sphi 0, %s145
    %s146 = sphi 0, %s143
    %s147 = sphi 0, %s146
    %s163 = sphi 0, %s147
    %s169 = sphi 0, %s171
    %s172 = sphi 0, %s169
    %s173 = sphi 0, %s172
    %s189 = sphi 0, %s173
  $region4: #{resblock1d_forward.3} parent=0 // loop_header_branch
    %16 = sbr.rel (%p14) target = $region8
  $region5: #{resblock1d_forward.3} parent=0 // loop_body
    %s18 = ssub.s32 %s13, 1
    %s19 = ssub.s32 %s13, 2
    %s20 = sadd.s32 %s13, 1
    %s21 = ssub.s32 %s13, %s20
    %p22 = scmp.eq.s32.totalorder %s21, 0
    %s24 = sadd.s32 %s23, 1
    %s25 = scalar_select %p22, %s23, %s24
    %p28 = pneg %p22
    %p29 = scmp.eq.s32.totalorder %s13, 1
    %p30 = por %p28, %p29
    %p31 = scmp.ne.s32.totalorder %s23, %s26
    %p32 = scmp.eq.s32.totalorder %s13, 0
    %p33 = por %p31, %p32
    %p34 = scmp.ne.s32.totalorder %s23, %s26
    %p35 = scmp.eq.s32.totalorder %s18, 1
    %p36 = por %p34, %p35
    %p37 = scmp.ne.s32.totalorder %s26, %s27
    %p38 = scmp.eq.s32.totalorder %s18, 0
    %p39 = por %p37, %p38
    %p40 = scmp.ne.s32.totalorder %s26, %s27
    %p41 = scmp.eq.s32.totalorder %s19, 1
    %p42 = por %p40, %p41
    %p44 = scmp.ne.s32.totalorder %s27, %s43
    %p45 = scmp.eq.s32.totalorder %s19, 0
    %p46 = por %p44, %p45
    %s48 = sadd.s32 %s47, 1
    %p51 = scmp.eq.s32.totalorder %s13, 1
    %p52 = scmp.ne.s32.totalorder %s47, %s49
    %p53 = scmp.eq.s32.totalorder %s13, 0
    %p54 = por %p52, %p53
    %p55 = scmp.ne.s32.totalorder %s47, %s49
    %p56 = scmp.eq.s32.totalorder %s18, 1
    %p57 = por %p55, %p56
    %p58 = scmp.ne.s32.totalorder %s49, %s50
    %p59 = scmp.eq.s32.totalorder %s18, 0
    %p60 = por %p58, %p59
    %p61 = scmp.ne.s32.totalorder %s49, %s50
    %p62 = scmp.eq.s32.totalorder %s19, 1
    %p63 = por %p61, %p62
    %p65 = scmp.ne.s32.totalorder %s50, %s64
    %p66 = scmp.eq.s32.totalorder %s19, 0
    %p67 = por %p65, %p66
    %s69 = sadd.s32 %s68, 1
    %p72 = scmp.eq.s32.totalorder %s13, 1
    %p73 = scmp.ne.s32.totalorder %s68, %s70
    %p74 = scmp.eq.s32.totalorder %s13, 0
    %p75 = por %p73, %p74
    %p76 = scmp.ne.s32.totalorder %s68, %s70
    %p77 = scmp.eq.s32.totalorder %s18, 1
    %p78 = por %p76, %p77
    %p79 = scmp.ne.s32.totalorder %s70, %s71
    %p80 = scmp.eq.s32.totalorder %s18, 0
    %p81 = por %p79, %p80
    %p82 = scmp.ne.s32.totalorder %s70, %s71
    %p83 = scmp.eq.s32.totalorder %s19, 1
    %p84 = por %p82, %p83
    %p86 = scmp.ne.s32.totalorder %s71, %s85
    %p87 = scmp.eq.s32.totalorder %s19, 0
    %p88 = por %p86, %p87
    %s89 = ssub.s32 %s13, %s20
    %p90 = scmp.eq.s32.totalorder %s89, 0
    %s92 = sadd.s32 %s91, 1
    %s93 = scalar_select %p90, %s91, %s92
    %p96 = pneg %p90
    %p97 = scmp.eq.s32.totalorder %s13, 1
    %p98 = por %p96, %p97
    %p99 = scmp.ne.s32.totalorder %s91, %s94
    %p100 = scmp.eq.s32.totalorder %s13, 0
    %p101 = por %p99, %p100
    %p102 = scmp.ne.s32.totalorder %s91, %s94
    %p103 = scmp.eq.s32.totalorder %s18, 1
    %p104 = por %p102, %p103
    %p105 = scmp.ne.s32.totalorder %s94, %s95
    %p106 = scmp.eq.s32.totalorder %s18, 0
    %p107 = por %p105, %p106
    %p108 = scmp.ne.s32.totalorder %s94, %s95
    %p109 = scmp.eq.s32.totalorder %s19, 1
    %p110 = por %p108, %p109
    %p112 = scmp.ne.s32.totalorder %s95, %s111
    %p113 = scmp.eq.s32.totalorder %s19, 0
    %p114 = por %p112, %p113
    %s115 = ssub.s32 %s13, %s20
    %p116 = scmp.eq.s32.totalorder %s115, 0
    %s118 = sadd.s32 %s117, 1
    %s119 = scalar_select %p116, %s117, %s118
    %p122 = pneg %p116
    %p123 = scmp.eq.s32.totalorder %s13, 1
    %p124 = por %p122, %p123
    %p125 = scmp.ne.s32.totalorder %s117, %s120
    %p126 = scmp.eq.s32.totalorder %s13, 0
    %p127 = por %p125, %p126
    %p128 = scmp.ne.s32.totalorder %s117, %s120
    %p129 = scmp.eq.s32.totalorder %s18, 1
    %p130 = por %p128, %p129
    %p131 = scmp.ne.s32.totalorder %s120, %s121
    %p132 = scmp.eq.s32.totalorder %s18, 0
    %p133 = por %p131, %p132
    %p134 = scmp.ne.s32.totalorder %s120, %s121
    %p135 = scmp.eq.s32.totalorder %s19, 1
    %p136 = por %p134, %p135
    %p138 = scmp.ne.s32.totalorder %s121, %s137
    %p139 = scmp.eq.s32.totalorder %s19, 0
    %p140 = por %p138, %p139
    %s141 = ssub.s32 %s13, %s20
    %p142 = scmp.eq.s32.totalorder %s141, 0
    %s144 = sadd.s32 %s143, 1
    %s145 = scalar_select %p142, %s143, %s144
    %p148 = pneg %p142
    %p149 = scmp.eq.s32.totalorder %s13, 1
    %p150 = por %p148, %p149
    %p151 = scmp.ne.s32.totalorder %s143, %s146
    %p152 = scmp.eq.s32.totalorder %s13, 0
    %p153 = por %p151, %p152
    %p154 = scmp.ne.s32.totalorder %s143, %s146
    %p155 = scmp.eq.s32.totalorder %s18, 1
    %p156 = por %p154, %p155
    %p157 = scmp.ne.s32.totalorder %s146, %s147
    %p158 = scmp.eq.s32.totalorder %s18, 0
    %p159 = por %p157, %p158
    %p160 = scmp.ne.s32.totalorder %s146, %s147
    %p161 = scmp.eq.s32.totalorder %s19, 1
    %p162 = por %p160, %p161
    %p164 = scmp.ne.s32.totalorder %s147, %s163
    %p165 = scmp.eq.s32.totalorder %s19, 0
    %p166 = por %p164, %p165
    %s167 = ssub.s32 %s13, %s20
    %p168 = scmp.eq.s32.totalorder %s167, 0
    %s170 = sadd.s32 %s169, 1
    %s171 = scalar_select %p168, %s169, %s170
    %p174 = pneg %p168
    %p175 = scmp.eq.s32.totalorder %s13, 1
    %p176 = por %p174, %p175
    %p177 = scmp.ne.s32.totalorder %s169, %s172
    %p178 = scmp.eq.s32.totalorder %s13, 0
    %p179 = por %p177, %p178
    %p180 = scmp.ne.s32.totalorder %s169, %s172
    %p181 = scmp.eq.s32.totalorder %s18, 1
    %p182 = por %p180, %p181
    %p183 = scmp.ne.s32.totalorder %s172, %s173
    %p184 = scmp.eq.s32.totalorder %s18, 0
    %p185 = por %p183, %p184
    %p186 = scmp.ne.s32.totalorder %s172, %s173
    %p187 = scmp.eq.s32.totalorder %s19, 1
    %p188 = por %p186, %p187
    %p190 = scmp.ne.s32.totalorder %s173, %s189
    %p191 = scmp.eq.s32.totalorder %s19, 0
    %p192 = por %p190, %p191
    %p193 = scmp.le.s32.totalorder 1, %s13
    %p194 = scmp.lt.s32.totalorder %s13, 3
    %p195 = pnand %p193, %p194
    %p196 = pneg %p195
    // Predicated region
    $region9: #{resblock1d_forward.3} parent=5 // pred_check
      _
    $region10: #{resblock1d_forward.3} parent=5 // pred_check_branch
      %198 = sbr.rel (%p195) target = $region12
    $region11: #{resblock1d_forward.3} parent=5 // pred_region
      %s199 = ssub.s32 %s13, 1
      // Predicated region
      $region13: #{resblock1d_forward.3} parent=11 // pred_check
        %p200 = pneg %p60
      $region14: #{resblock1d_forward.3} parent=11 // pred_check_branch
        %202 = sbr.rel (%p200) target = $region16
      $region15: #{resblock1d_forward.3} parent=11 // pred_region
        _
      $region16: #{resblock1d_forward.3} parent=11 // pred_fallthru
        _
      // Predicated region
      $region17: #{resblock1d_forward.3} parent=11 // pred_check
        %p203 = pneg %p81
      $region18: #{resblock1d_forward.3} parent=11 // pred_check_branch
        %205 = sbr.rel (%p203) target = $region20
      $region19: #{resblock1d_forward.3} parent=11 // pred_region
        _
      $region20: #{resblock1d_forward.3} parent=11 // pred_fallthru
        _
    $region12: #{resblock1d_forward.3} parent=5 // pred_fallthru
      _
    %p206 = scmp.lt.s32.totalorder %s13, 2
    // Predicated region
    $region21: #{resblock1d_forward.3} parent=5 // pred_check
      %p207 = pneg %p206
    $region22: #{resblock1d_forward.3} parent=5 // pred_check_branch
      %209 = sbr.rel (%p207) target = $region24
    $region23: #{resblock1d_forward.3} parent=5 // pred_region
      // Predicated region
      $region25: #{resblock1d_forward.3} parent=23 // pred_check
        %p210 = pneg %p33
      $region26: #{resblock1d_forward.3} parent=23 // pred_check_branch
        %212 = sbr.rel (%p210) target = $region28
      $region27: #{resblock1d_forward.3} parent=23 // pred_region
        %p213 = scmp.lt.s32.totalorder %s13, 1
        %s214 = scalar_select %p213, %s13, 1
        %s215 = smul.addr %s214, 3
        %s216 = smul.addr %s215, 4
        %s217 = scalar_lea.vmem %s0, %s216
      $region28: #{resblock1d_forward.3} parent=23 // pred_fallthru
        _
    $region24: #{resblock1d_forward.3} parent=5 // pred_fallthru
      _
    %p218 = scmp.le.s32.totalorder 1, %s13
    %p219 = scmp.lt.s32.totalorder %s13, 3
    %p220 = pnand %p218, %p219
    %p221 = pneg %p220
    // Predicated region
    $region29: #{resblock1d_forward.3} parent=5 // pred_check
      _
    $region30: #{resblock1d_forward.3} parent=5 // pred_check_branch
      %223 = sbr.rel (%p220) target = $region32
    $region31: #{resblock1d_forward.3} parent=5 // pred_region
      %s224 = ssub.s32 %s13, 1
      %p225 = scmp.lt.s32.totalorder %s18, 1
      %s226 = scalar_select %p225, %s18, 1
      %s227 = smul.addr %s226, 3
      %s228 = smul.addr %s227, 4
      %s229 = scalar_lea.vmem %s0, %s228
      %p230 = pneg %p39
      %p231 = pneg %p36
      %p232 = pneg %p60
      %p233 = pneg %p57
      %p234 = pneg %p81
      %p235 = pneg %p78
      %p236 = pneg %p107
      %p237 = pneg %p104
      %p238 = scmp.lt.s32.totalorder %s18, 1
      %s239 = scalar_select %p238, %s18, 1
      %s240 = smul.addr %s239, 2
      %s241 = smul.addr %s240, 4
      %s242 = scalar_lea.vmem %s3, %s241
      %p243 = pneg %p133
      %p244 = pneg %p130
      %p245 = scmp.lt.s32.totalorder %s18, 1
      %s246 = scalar_select %p245, %s18, 1
      %s247 = smul.addr %s246, 2
      %s248 = scalar_lea.vmem %s4, %s247
      %p249 = pneg %p159
      %p250 = pneg %p156
      %p251 = scmp.lt.s32.totalorder %s18, 1
      %s252 = scalar_select %p251, %s18, 1
      %s253 = smul.addr %s252, 2
      %s254 = smul.addr %s253, 4
      %s255 = scalar_lea.vmem %s5, %s254
      %p256 = pneg %p185
      %p257 = pneg %p182
      %p258 = scmp.lt.s32.totalorder %s18, 1
      %s259 = scalar_select %p258, %s18, 1
      %s260 = smul.addr %s259, 2
      %s261 = scalar_lea.vmem %s6, %s260
      %p262 = scmp.lt.s32.totalorder %s18, 1
      %s263 = scalar_select %p262, %s18, 1
      %s264 = smul.addr %s263, 3
      %s265 = smul.addr %s264, 4
      %s266 = scalar_lea.vmem %s0, %s265
      %p267 = scmp.lt.s32.totalorder %s18, 1
      %s268 = scalar_select %p267, %s18, 1
      %s269 = smul.addr %s268, 2
      %s270 = smul.addr %s269, 4
      %s271 = scalar_lea.vmem %s3, %s270
      %p272 = scmp.lt.s32.totalorder %s18, 1
      %s273 = scalar_select %p272, %s18, 1
      %s274 = smul.addr %s273, 2
      %s275 = scalar_lea.vmem %s4, %s274
      %p276 = scmp.lt.s32.totalorder %s18, 1
      %s277 = scalar_select %p276, %s18, 1
      %s278 = smul.addr %s277, 2
      %s279 = smul.addr %s278, 4
      %s280 = scalar_lea.vmem %s5, %s279
      %p281 = scmp.lt.s32.totalorder %s18, 1
      %s282 = scalar_select %p281, %s18, 1
      %s283 = smul.addr %s282, 2
      %s284 = scalar_lea.vmem %s6, %s283
      %v285 = vld [vmem:[%s266] sm:$0xf]
      %v286 = vld [vmem:[%s266 + $0x4] sm:$0xf]
      %v287 = vld [vmem:[%s266 + $0x8] sm:$0x1]
      %v288 = vunpack.c.l.bf16 %v285
      %v289 = vunpack.c.l.bf16 %v286
      %v290 = vunpack.c.l.bf16 %v287
      %vm291 = vcmask 31744
      %v292 = vsel %vm291, %v288, 0.0
      %v293 = vsel %vm291, %v289, 0.0
      %v294 = vsel %vm291, %v290, 0.0
      %v295 = vld [vmem:[%s1] sm:$0xf]
      %v296 = vld [vmem:[%s1 + $0x4] sm:$0xf]
      %v297 = vld [vmem:[%s1 + $0x8] sm:$0xf]
      %v298 = vld [vmem:[%s1 + $0xc] sm:$0xf]
      %v299 = vld [vmem:[%s1 + $0x10] sm:$0xf]
      %v300 = vld [vmem:[%s1 + $0x14] sm:$0xf]
      %v301 = vld [vmem:[%s1 + $0x18] sm:$0xf]
      %v302 = vld [vmem:[%s1 + $0x1c] sm:$0xf]
      %v303 = vld [vmem:[%s1 + $0x20] sm:$0xf]
      %v304 = vld [vmem:[%s1 + $0x24] sm:$0xf]
      %v305 = vld [vmem:[%s1 + $0x28] sm:$0xf]
      %v306 = vld [vmem:[%s1 + $0x2c] sm:$0xf]
      %v307 = vld [vmem:[%s1 + $0x30] sm:$0xf]
      %v308 = vld [vmem:[%s1 + $0x34] sm:$0xf]
      %v309 = vld [vmem:[%s1 + $0x38] sm:$0xf]
      %v310 = vld [vmem:[%s1 + $0x3c] sm:$0xf]
      %v311 = vld [vmem:[%s1 + $0x40] sm:$0xf]
      %v312 = vld [vmem:[%s1 + $0x44] sm:$0xf]
      %v313 = vld [vmem:[%s1 + $0x48] sm:$0xf]
      %v314 = vld [vmem:[%s1 + $0x4c] sm:$0xf]
      %v315 = vld [vmem:[%s1 + $0x50] sm:$0xf]
      %v316 = vld [vmem:[%s1 + $0x54] sm:$0xf]
      %v317 = vld [vmem:[%s1 + $0x58] sm:$0xf]
      %v318 = vld [vmem:[%s1 + $0x5c] sm:$0xf]
      %v319 = vld [vmem:[%s1 + $0x60] sm:$0xf]
      %v320 = vld [vmem:[%s1 + $0x64] sm:$0xf]
      %v321 = vld [vmem:[%s1 + $0x68] sm:$0xf]
      %v322 = vld [vmem:[%s1 + $0x6c] sm:$0xf]
      %v323 = vld [vmem:[%s1 + $0x70] sm:$0xf]
      %v324 = vld [vmem:[%s1 + $0x74] sm:$0xf]
      %v325 = vld [vmem:[%s1 + $0x78] sm:$0xf]
      %v326 = vld [vmem:[%s1 + $0x7c] sm:$0xf]
      %v327 = vld [vmem:[%s1 + $0x80] sm:$0xf]
      %v328 = vld [vmem:[%s1 + $0x84] sm:$0xf]
      %v329 = vld [vmem:[%s1 + $0x88] sm:$0xf]
      %v330 = vld [vmem:[%s1 + $0x8c] sm:$0xf]
      %v331 = vld [vmem:[%s1 + $0x90] sm:$0xf]
      %v332 = vld [vmem:[%s1 + $0x94] sm:$0xf]
      %v333 = vld [vmem:[%s1 + $0x98] sm:$0xf]
      %v334 = vld [vmem:[%s1 + $0x9c] sm:$0xf]
      %v335 = vld [vmem:[%s1 + $0xa0] sm:$0xf]
      %v336 = vld [vmem:[%s1 + $0xa4] sm:$0xf]
      %v337 = vld [vmem:[%s1 + $0xa8] sm:$0xf]
      %v338 = vld [vmem:[%s1 + $0xac] sm:$0xf]
      %v339 = vld [vmem:[%s1 + $0xb0] sm:$0xf]
      %v340 = vld [vmem:[%s1 + $0xb4] sm:$0xf]
      %v341 = vld [vmem:[%s1 + $0xb8] sm:$0xf]
      %v342 = vld [vmem:[%s1 + $0xbc] sm:$0xf]
      %v343 = vpack.c.bf16 %v293, %v292
      %v344 = vpack.c.bf16 %v294, %v294
      %vm345 = vsmask.f32 7424
      %v347 = vshrl.u32 %v343, 16
      %v349 = vshll.u32 %v343, 16
      %v351 = vrot.slane %v349, 1
      %v352 = vor.u32 %v347, %v351
      %v354 = vshll.u32 %v344, 16
      %v356 = vrot.slane %v354, 1
      %v357 = vsel %vm345, %v352, %v356
      %v375 = vunpack.c.l.b16 %v311
      %v376 = vunpack.c.l.b16 %v312
      %v377 = vunpack.c.l.b16 %v313
      %v378 = vunpack.c.l.b16 %v314
      %v379 = vunpack.c.l.b16 %v315
      %v380 = vunpack.c.l.b16 %v316
      %v381 = vunpack.c.l.b16 %v317
      %v382 = vunpack.c.l.b16 %v318
      %v383 = vunpack.c.l.b16 %v319
      %v384 = vunpack.c.l.b16 %v320
      %v385 = vunpack.c.l.b16 %v321
      %v386 = vunpack.c.l.b16 %v322
      %v387 = vunpack.c.l.b16 %v323
      %v388 = vunpack.c.l.b16 %v324
      %v389 = vunpack.c.l.b16 %v325
      %v390 = vunpack.c.l.b16 %v326
      %v391 = vpack.c.b16 %v376, %v375
      %v392 = vpack.c.b16 %v378, %v377
      %v393 = vpack.c.b16 %v380, %v379
      %v394 = vpack.c.b16 %v382, %v381
      %v395 = vpack.c.b16 %v384, %v383
      %v396 = vpack.c.b16 %v386, %v385
      %v397 = vpack.c.b16 %v388, %v387
      %v398 = vpack.c.b16 %v390, %v389
      %407 = vmatpush.bf16.msra.mxu0 %v398
      %408 = vmatpush.bf16.msra.mxu0 %v397
      %409 = vmatpush.bf16.msra.mxu0 %v396
      %410 = vmatpush.bf16.msra.mxu0 %v395
      %411 = vmatpush.bf16.msra.mxu0 %v394
      %412 = vmatpush.bf16.msra.mxu0 %v393
      %413 = vmatpush.bf16.msra.mxu0 %v392
      %414 = vmatpush.bf16.msra.mxu0 %v391
      %415 = vmatmul.bf16.gmra.mxu0 %v357
      %v416 = vpop.f32.mrf.mxu0
      %v417 = vadd.f32 0.0, %v416
      %v418 = vpop.f32.mrf.mxu0
      %v419 = vadd.f32 0.0, %v418
      %420 = vdwg.mxu0
      %v437 = vunpack.c.l.b16 %v295
      %v438 = vunpack.c.l.b16 %v296
      %v439 = vunpack.c.l.b16 %v297
      %v440 = vunpack.c.l.b16 %v298
      %v441 = vunpack.c.l.b16 %v299
      %v442 = vunpack.c.l.b16 %v300
      %v443 = vunpack.c.l.b16 %v301
      %v444 = vunpack.c.l.b16 %v302
      %v445 = vunpack.c.l.b16 %v303
      %v446 = vunpack.c.l.b16 %v304
      %v447 = vunpack.c.l.b16 %v305
      %v448 = vunpack.c.l.b16 %v306
      %v449 = vunpack.c.l.b16 %v307
      %v450 = vunpack.c.l.b16 %v308
      %v451 = vunpack.c.l.b16 %v309
      %v452 = vunpack.c.l.b16 %v310
      %v453 = vpack.c.b16 %v438, %v437
      %v454 = vpack.c.b16 %v440, %v439
      %v455 = vpack.c.b16 %v442, %v441
      %v456 = vpack.c.b16 %v444, %v443
      %v457 = vpack.c.b16 %v446, %v445
      %v458 = vpack.c.b16 %v448, %v447
      %v459 = vpack.c.b16 %v450, %v449
      %v460 = vpack.c.b16 %v452, %v451
      %469 = vmatpush.bf16.msra.mxu0 %v460
      %470 = vmatpush.bf16.msra.mxu0 %v459
      %471 = vmatpush.bf16.msra.mxu0 %v458
      %472 = vmatpush.bf16.msra.mxu0 %v457
      %473 = vmatpush.bf16.msra.mxu0 %v456
      %474 = vmatpush.bf16.msra.mxu0 %v455
      %475 = vmatpush.bf16.msra.mxu0 %v454
      %476 = vmatpush.bf16.msra.mxu0 %v453
      %477 = vmatmul.bf16.gmra.mxu0 %v343
      %v478 = vpop.f32.mrf.mxu0
      %v479 = vadd.f32 %v417, %v478
      %v480 = vpop.f32.mrf.mxu0
      %v481 = vadd.f32 %v419, %v480
      %482 = vdwg.mxu0
      %vm485 = vcmask 1046528
      %v486 = vrot.slane %v343, 1
      %v487 = vrot.slane %v344, 1
      %v488 = vsel %vm485, %v486, %v487
      %v506 = vunpack.c.l.b16 %v327
      %v507 = vunpack.c.l.b16 %v328
      %v508 = vunpack.c.l.b16 %v329
      %v509 = vunpack.c.l.b16 %v330
      %v510 = vunpack.c.l.b16 %v331
      %v511 = vunpack.c.l.b16 %v332
      %v512 = vunpack.c.l.b16 %v333
      %v513 = vunpack.c.l.b16 %v334
      %v514 = vunpack.c.l.b16 %v335
      %v515 = vunpack.c.l.b16 %v336
      %v516 = vunpack.c.l.b16 %v337
      %v517 = vunpack.c.l.b16 %v338
      %v518 = vunpack.c.l.b16 %v339
      %v519 = vunpack.c.l.b16 %v340
      %v520 = vunpack.c.l.b16 %v341
      %v521 = vunpack.c.l.b16 %v342
      %v522 = vpack.c.b16 %v507, %v506
      %v523 = vpack.c.b16 %v509, %v508
      %v524 = vpack.c.b16 %v511, %v510
      %v525 = vpack.c.b16 %v513, %v512
      %v526 = vpack.c.b16 %v515, %v514
      %v527 = vpack.c.b16 %v517, %v516
      %v528 = vpack.c.b16 %v519, %v518
      %v529 = vpack.c.b16 %v521, %v520
      %538 = vmatpush.bf16.msra.mxu0 %v529
      %539 = vmatpush.bf16.msra.mxu0 %v528
      %540 = vmatpush.bf16.msra.mxu0 %v527
      %541 = vmatpush.bf16.msra.mxu0 %v526
      %542 = vmatpush.bf16.msra.mxu0 %v525
      %543 = vmatpush.bf16.msra.mxu0 %v524
      %544 = vmatpush.bf16.msra.mxu0 %v523
      %545 = vmatpush.bf16.msra.mxu0 %v522
      %546 = vmatmul.bf16.gmra.mxu0 %v488
      %v547 = vpop.f32.mrf.mxu0
      %v548 = vadd.f32 0.0, %v547
      %v549 = vpop.f32.mrf.mxu0
      %v550 = vadd.f32 0.0, %v549
      %551 = vdwg.mxu0
      %v552 = vadd.f32 %v479, %v548
      %v553 = vadd.f32 %v481, %v550
      %v554 = vpack.c.bf16 %v552, %v552
      %v555 = vpack.c.bf16 %v553, %v553
      %556 = vst [vmem:[%s271] sm:$0xf] %v554
      %557 = vst [vmem:[%s271 + $0x4] sm:$0xf] %v555
      %v558 = vadd.f32 %v552, %v553
      %v559 = vrot.slane %v558, 4
      %v560 = vadd.f32 %v558, %v559
      %v561 = vrot.slane %v560, 2
      %v562 = vadd.f32 %v560, %v561
      %v563 = vrot.slane %v562, 1
      %v564 = vadd.f32 %v562, %v563
      %v565 = vmul.f32 %v552, %v552
      %v566 = vmul.f32 %v553, %v553
      %v567 = vadd.f32 %v565, %v566
      %v568 = vrot.slane %v567, 4
      %v569 = vadd.f32 %v567, %v568
      %v570 = vrot.slane %v569, 2
      %v571 = vadd.f32 %v569, %v570
      %v572 = vrot.slane %v571, 1
      %v573 = vadd.f32 %v571, %v572
      %vm574 = vcmask 1040384
      %v575 = vsel %vm574, %v564, %v573
      %576 = vst [vmem:[%s275] sm:$0x3] %v575
      %v577 = vld [vmem:[%s2] sm:$0xf]
      %v578 = vld [vmem:[%s2 + $0x4] sm:$0xf]
      %v579 = vld [vmem:[%s2 + $0x8] sm:$0xf]
      %v580 = vld [vmem:[%s2 + $0xc] sm:$0xf]
      %v581 = vld [vmem:[%s2 + $0x10] sm:$0xf]
      %v582 = vld [vmem:[%s2 + $0x14] sm:$0xf]
      %v583 = vld [vmem:[%s2 + $0x18] sm:$0xf]
      %v584 = vld [vmem:[%s2 + $0x1c] sm:$0xf]
      %v585 = vld [vmem:[%s2 + $0x20] sm:$0xf]
      %v586 = vld [vmem:[%s2 + $0x24] sm:$0xf]
      %v587 = vld [vmem:[%s2 + $0x28] sm:$0xf]
      %v588 = vld [vmem:[%s2 + $0x2c] sm:$0xf]
      %v589 = vld [vmem:[%s2 + $0x30] sm:$0xf]
      %v590 = vld [vmem:[%s2 + $0x34] sm:$0xf]
      %v591 = vld [vmem:[%s2 + $0x38] sm:$0xf]
      %v592 = vld [vmem:[%s2 + $0x3c] sm:$0xf]
      %v609 = vunpack.c.l.b16 %v577
      %v610 = vunpack.c.l.b16 %v578
      %v611 = vunpack.c.l.b16 %v579
      %v612 = vunpack.c.l.b16 %v580
      %v613 = vunpack.c.l.b16 %v581
      %v614 = vunpack.c.l.b16 %v582
      %v615 = vunpack.c.l.b16 %v583
      %v616 = vunpack.c.l.b16 %v584
      %v617 = vunpack.c.l.b16 %v585
      %v618 = vunpack.c.l.b16 %v586
      %v619 = vunpack.c.l.b16 %v587
      %v620 = vunpack.c.l.b16 %v588
      %v621 = vunpack.c.l.b16 %v589
      %v622 = vunpack.c.l.b16 %v590
      %v623 = vunpack.c.l.b16 %v591
      %v624 = vunpack.c.l.b16 %v592
      %v625 = vpack.c.b16 %v610, %v609
      %v626 = vpack.c.b16 %v612, %v611
      %v627 = vpack.c.b16 %v614, %v613
      %v628 = vpack.c.b16 %v616, %v615
      %v629 = vpack.c.b16 %v618, %v617
      %v630 = vpack.c.b16 %v620, %v619
      %v631 = vpack.c.b16 %v622, %v621
      %v632 = vpack.c.b16 %v624, %v623
      %641 = vmatpush.bf16.msra.mxu0 %v632
      %642 = vmatpush.bf16.msra.mxu0 %v631
      %643 = vmatpush.bf16.msra.mxu0 %v630
      %644 = vmatpush.bf16.msra.mxu0 %v629
      %645 = vmatpush.bf16.msra.mxu0 %v628
      %646 = vmatpush.bf16.msra.mxu0 %v627
      %647 = vmatpush.bf16.msra.mxu0 %v626
      %648 = vmatpush.bf16.msra.mxu0 %v625
      %649 = vmatmul.bf16.gmra.mxu0 %v357
      %v650 = vpop.f32.mrf.mxu0
      %v651 = vadd.f32 0.0, %v650
      %v652 = vpop.f32.mrf.mxu0
      %v653 = vadd.f32 0.0, %v652
      %654 = vdwg.mxu0
      %v655 = vpack.c.bf16 %v651, %v651
      %v656 = vpack.c.bf16 %v653, %v653
      %657 = vst [vmem:[%s280] sm:$0xf] %v655
      %658 = vst [vmem:[%s280 + $0x4] sm:$0xf] %v656
      %v659 = vadd.f32 %v651, %v653
      %v660 = vrot.slane %v659, 4
      %v661 = vadd.f32 %v659, %v660
      %v662 = vrot.slane %v661, 2
      %v663 = vadd.f32 %v661, %v662
      %v664 = vrot.slane %v663, 1
      %v665 = vadd.f32 %v663, %v664
      %v666 = vmul.f32 %v651, %v651
      %v667 = vmul.f32 %v653, %v653
      %v668 = vadd.f32 %v666, %v667
      %v669 = vrot.slane %v668, 4
      %v670 = vadd.f32 %v668, %v669
      %v671 = vrot.slane %v670, 2
      %v672 = vadd.f32 %v670, %v671
      %v673 = vrot.slane %v672, 1
      %v674 = vadd.f32 %v672, %v673
      %v675 = vsel %vm574, %v665, %v674
      %676 = vst [vmem:[%s284] sm:$0x3] %v675
      %p677 = scmp.lt.s32.totalorder %s18, 1
      %s678 = scalar_select %p677, %s18, 1
      %s679 = smul.addr %s678, 2
      %s680 = smul.addr %s679, 4
      %s681 = scalar_lea.vmem %s3, %s680
      %p682 = scmp.lt.s32.totalorder %s18, 1
      %s683 = scalar_select %p682, %s18, 1
      %s684 = smul.addr %s683, 2
      %s685 = scalar_lea.vmem %s4, %s684
      %p686 = scmp.lt.s32.totalorder %s18, 1
      %s687 = scalar_select %p686, %s18, 1
      %s688 = smul.addr %s687, 2
      %s689 = smul.addr %s688, 4
      %s690 = scalar_lea.vmem %s5, %s689
      %p691 = scmp.lt.s32.totalorder %s18, 1
      %s692 = scalar_select %p691, %s18, 1
      %s693 = smul.addr %s692, 2
      %s694 = scalar_lea.vmem %s6, %s693
      // Predicated region
      $region33: #{resblock1d_forward.3} parent=31 // pred_check
        %p695 = pneg %p104
      $region34: #{resblock1d_forward.3} parent=31 // pred_check_branch
        %697 = sbr.rel (%p695) target = $region36
      $region35: #{resblock1d_forward.3} parent=31 // pred_region
        _
      $region36: #{resblock1d_forward.3} parent=31 // pred_fallthru
        _
      // Predicated region
      $region37: #{resblock1d_forward.3} parent=31 // pred_check
        %p698 = pneg %p130
      $region38: #{resblock1d_forward.3} parent=31 // pred_check_branch
        %700 = sbr.rel (%p698) target = $region40
      $region39: #{resblock1d_forward.3} parent=31 // pred_region
        _
      $region40: #{resblock1d_forward.3} parent=31 // pred_fallthru
        _
      // Predicated region
      $region41: #{resblock1d_forward.3} parent=31 // pred_check
        %p701 = pneg %p156
      $region42: #{resblock1d_forward.3} parent=31 // pred_check_branch
        %703 = sbr.rel (%p701) target = $region44
      $region43: #{resblock1d_forward.3} parent=31 // pred_region
        _
      $region44: #{resblock1d_forward.3} parent=31 // pred_fallthru
        _
      // Predicated region
      $region45: #{resblock1d_forward.3} parent=31 // pred_check
        %p704 = pneg %p182
      $region46: #{resblock1d_forward.3} parent=31 // pred_check_branch
        %706 = sbr.rel (%p704) target = $region48
      $region47: #{resblock1d_forward.3} parent=31 // pred_region
        _
      $region48: #{resblock1d_forward.3} parent=31 // pred_fallthru
        _
    $region32: #{resblock1d_forward.3} parent=5 // pred_fallthru
      _
    %p707 = scmp.le.s32.totalorder 2, %s13
    // Predicated region
    $region49: #{resblock1d_forward.3} parent=5 // pred_check
      %p708 = pneg %p707
    $region50: #{resblock1d_forward.3} parent=5 // pred_check_branch
      %710 = sbr.rel (%p708) target = $region52
    $region51: #{resblock1d_forward.3} parent=5 // pred_region
      %s711 = ssub.s32 %s13, 2
      // Predicated region
      $region53: #{resblock1d_forward.3} parent=51 // pred_check
        %p712 = pneg %p110
      $region54: #{resblock1d_forward.3} parent=51 // pred_check_branch
        %714 = sbr.rel (%p712) target = $region56
      $region55: #{resblock1d_forward.3} parent=51 // pred_region
        %p715 = scmp.lt.s32.totalorder %s19, 1
        %s716 = scalar_select %p715, %s19, 1
        %s717 = smul.addr %s716, 2
        %s718 = smul.addr %s717, 4
        %s719 = scalar_lea.vmem %s3, %s718
      $region56: #{resblock1d_forward.3} parent=51 // pred_fallthru
        _
      // Predicated region
      $region57: #{resblock1d_forward.3} parent=51 // pred_check
        %p720 = pneg %p136
      $region58: #{resblock1d_forward.3} parent=51 // pred_check_branch
        %722 = sbr.rel (%p720) target = $region60
      $region59: #{resblock1d_forward.3} parent=51 // pred_region
        %p723 = scmp.lt.s32.totalorder %s19, 1
        %s724 = scalar_select %p723, %s19, 1
        %s725 = smul.addr %s724, 2
        %s726 = scalar_lea.vmem %s4, %s725
      $region60: #{resblock1d_forward.3} parent=51 // pred_fallthru
        _
      // Predicated region
      $region61: #{resblock1d_forward.3} parent=51 // pred_check
        %p727 = pneg %p162
      $region62: #{resblock1d_forward.3} parent=51 // pred_check_branch
        %729 = sbr.rel (%p727) target = $region64
      $region63: #{resblock1d_forward.3} parent=51 // pred_region
        %p730 = scmp.lt.s32.totalorder %s19, 1
        %s731 = scalar_select %p730, %s19, 1
        %s732 = smul.addr %s731, 2
        %s733 = smul.addr %s732, 4
        %s734 = scalar_lea.vmem %s5, %s733
      $region64: #{resblock1d_forward.3} parent=51 // pred_fallthru
        _
      // Predicated region
      $region65: #{resblock1d_forward.3} parent=51 // pred_check
        %p735 = pneg %p188
      $region66: #{resblock1d_forward.3} parent=51 // pred_check_branch
        %737 = sbr.rel (%p735) target = $region68
      $region67: #{resblock1d_forward.3} parent=51 // pred_region
        %p738 = scmp.lt.s32.totalorder %s19, 1
        %s739 = scalar_select %p738, %s19, 1
        %s740 = smul.addr %s739, 2
        %s741 = scalar_lea.vmem %s6, %s740
      $region68: #{resblock1d_forward.3} parent=51 // pred_fallthru
        _
    $region52: #{resblock1d_forward.3} parent=5 // pred_fallthru
      _
  $region6: #{resblock1d_forward.3} parent=0 // loop_footer
    %s17 = sadd.s32 1, %s13
  $region7: #{resblock1d_forward.3} parent=0 // loop_footer_branch
    %12 = sbr.rel target = $region3
  $region8: #{resblock1d_forward.3} parent=0 // loop_exit
    _

</llo_original>
